<compile_context>
chip_gen: v7x
topology: tpu7x:2x2x1
jax: 0.10.0
libtpu: 0.0.40
codegen_flags: <defaults>
</compile_context>

<pallas_src>
import functools
import math

import jax
import jax.numpy as jnp
import numpy as np
from jax.experimental import pallas as pl
from jax.experimental.pallas import tpu as pltpu


def _round_up(x, m):
    return (x + m - 1) // m * m


def _aligner_kernel(x_ref, w1_ref, b1_ref, w2_ref, b2_ref, mask_ref, o_ref,
                    p1, xf2, p2, z2, *,
                    k, Wp, L, MZ, LX2, skew, off, C0, C1, C2):
    """Fused Conv(k) -> LeakyReLU -> Conv(k) over a lane-dense flat frame.

    Frame layout: lane index j = i*s_stride + y*Wp + x over each image's
    zero-padded (Hp, Wp) plane; a filter tap (ky, kx) is then just a constant
    lane offset ky*Wp + kx.  Channels live on sublanes.
    """
    frame1 = x_ref[0]                          # (C0, L + TAIL) bf16, pre-padded

    # ---- conv1: full k*k*C0 im2col (49 shifted copies of the 2-row frame)
    #      + ONE 98-deep matmul.  No Z1 materialization, no ky shift-adds.
    for ky in range(k):
        for kx in range(k):
            t = ky * k + kx
            sh = ky * Wp + kx
            p1[t * C0:(t + 1) * C0, :] = frame1[:, sh:sh + L]
    acc1 = jnp.dot(w1_ref[...], p1[...], preferred_element_type=jnp.float32)

    z = acc1 + b1_ref[...]                     # bias add, f32
    # LeakyReLU(0.01) via max (slope < 1), then zero pad/garbage columns.
    # The mask multiply is required for conv2's receptive-field correctness.
    h = jnp.maximum(z, 0.01 * z) * mask_ref[...]

    # ---- layer-2 padded frame (stays in VMEM, bf16).
    # Frame origin is skewed so the big h store lands 128-lane aligned
    # (skew + off is a multiple of 128); only the pad columns get zeroed.
    orig = skew + off
    if orig > 0:
        xf2[:, 0:orig] = jnp.zeros((C1, orig), xf2.dtype)
    if LX2 - (orig + L) > 0:
        xf2[:, orig + L:LX2] = jnp.zeros((C1, LX2 - (orig + L)), xf2.dtype)
    xf2[:, orig:orig + L] = h.astype(xf2.dtype)

    # ---- conv2: kx-fat im2col + one matmul + ky shift-add combine.
    for kx in range(k):
        p2[kx * C1:(kx + 1) * C1, :] = xf2[:, skew + kx:skew + kx + MZ]
    z2[...] = jnp.dot(w2_ref[...], p2[...], preferred_element_type=jnp.float32)

    acc2 = z2[0:C2, 0:L]
    for ky in range(1, k):
        acc2 = acc2 + z2[ky * C2:(ky + 1) * C2, ky * Wp:ky * Wp + L]

    o_ref[...] = (acc2 + b2_ref[...]).astype(o_ref.dtype)


def _make_valid_mask(nb, s_stride, H, W, Wp):
    """1.0 at flat positions j = i*s_stride + y*Wp + x with y<H, x<W; else 0."""
    L = nb * s_stride
    m = np.zeros((1, L), np.float32)
    for i in range(nb):
        for y in range(H):
            base = i * s_stride + y * Wp
            m[0, base:base + W] = 1.0
    return jnp.asarray(m)


def aligner_forward(x_nchw, params, *, batch_block=None):
    """Fused Pallas equivalent of Aligner.forward: NCHW in -> NHWC out."""
    (w1, b1), (w2, b2) = params               # weights in HWIO: (k, k, cin, cout)
    N, C0, H, W = x_nchw.shape
    k = w1.shape[0]
    C1, C2 = w1.shape[-1], w2.shape[-1]
    pad = (k - 1) // 2
    Hp, Wp = H + 2 * pad, W + 2 * pad
    S = Hp * Wp
    s_stride = _round_up(S, 128)              # per-image lane stride in the frame
    off = pad * Wp + pad                      # flat offset of output (0,0) in a plane
    skew = (-off) % 128                       # makes (skew + off) a multiple of 128
    TAIL = _round_up((k - 1) * (Wp + 1), 128)  # slack so every tap slice is in-bounds

    def scratch_bytes(nb):
        Lb = nb * s_stride
        MZb = Lb + TAIL
        LXb = MZb + _round_up(skew + k, 128)
        return (k * k * C0 * Lb * 2            # P1 (bf16)
                + C1 * LXb * 2                 # layer-2 frame (bf16)
                + k * C1 * MZb * 2             # P2 (bf16)
                + k * C2 * MZb * 4             # Z2 (f32)
                + 2 * (C0 * (Lb + TAIL) * 2 + C2 * Lb * 4)  # dbl-buffered in/out
                + Lb * 4)                      # mask

    budget = 20 * 1024 * 1024                 # stays well under VMEM on v5e/v6e/v7x
    if batch_block is not None:
        if N % batch_block != 0:              # fail loudly instead of silent fallback
            raise ValueError(f"batch_block={batch_block} must divide N={N}")
        NB = batch_block
    else:
        divs = [d for d in range(1, N + 1) if N % d == 0]
        fit = [d for d in divs if scratch_bytes(d) <= budget] or [1]
        if N >= 2:                            # >= 2 grid steps -> both v7x TCs busy
            multi = [d for d in fit if N // d >= 2]
            fit = multi or fit
        NB = max(fit)
    # TODO(synk): for N == 1 (or a single huge image) the frame is not split
    # across the two v7x TensorCores; that would need spatial tiling of the
    # flat frame, which this module's small inputs do not require.

    G = N // NB
    L = NB * s_stride
    MZ = L + TAIL
    LX2 = MZ + _round_up(skew + k, 128)
    vmem_limit = int(min(48 << 20, max(16 << 20, 2 * scratch_bytes(NB) + (4 << 20))))

    # ---- wrapper-side zero-pad + flatten into the lane-dense frame (XLA). ----
    xp = jnp.pad(x_nchw.astype(jnp.float32),
                 ((0, 0), (0, 0), (pad, pad), (pad, pad)))        # (N, C0, Hp, Wp)
    xf = xp.reshape(N, C0, S)
    xf = jnp.pad(xf, ((0, 0), (0, 0), (0, s_stride - S)))
    xf = xf.reshape(G, NB, C0, s_stride).transpose(0, 2, 1, 3).reshape(G, C0, L)
    xf = jnp.pad(xf, ((0, 0), (0, 0), (0, TAIL))).astype(jnp.bfloat16)

    # One-off tiny relayouts of the parameters into the kernel's matmul layout.
    # conv1 (full im2col):  W1[co, (ky*k + kx)*C0 + ci] = w1[ky, kx, ci, co]
    w1_2d = jnp.transpose(w1, (3, 0, 1, 2)).reshape(C1, k * k * C0).astype(jnp.bfloat16)
    # conv2 (kx-fat):       W2[ky*C2 + co, kx*C1 + ci] = w2[ky, kx, ci, co]
    w2_2d = jnp.transpose(w2, (0, 3, 1, 2)).reshape(k * C2, k * C1).astype(jnp.bfloat16)
    b1c = b1.reshape(C1, 1).astype(jnp.float32)
    b2c = b2.reshape(C2, 1).astype(jnp.float32)
    mask = _make_valid_mask(NB, s_stride, H, W, Wp)

    kernel = functools.partial(
        _aligner_kernel, k=k, Wp=Wp, L=L, MZ=MZ, LX2=LX2, skew=skew, off=off,
        C0=C0, C1=C1, C2=C2)

    out_flat = pl.pallas_call(
        kernel,
        out_shape=jax.ShapeDtypeStruct((C2, G * L), x_nchw.dtype),
        grid=(G,),
        in_specs=[
            pl.BlockSpec((1, C0, L + TAIL), lambda b: (b, 0, 0)),   # flat frame
            pl.BlockSpec((C1, k * k * C0), lambda b: (0, 0)),       # W1 (full im2col)
            pl.BlockSpec((C1, 1), lambda b: (0, 0)),                # b1
            pl.BlockSpec((k * C2, k * C1), lambda b: (0, 0)),       # W2 (kx-fat)
            pl.BlockSpec((C2, 1), lambda b: (0, 0)),                # b2
            pl.BlockSpec((1, L), lambda b: (0, 0)),                 # validity mask
        ],
        out_specs=pl.BlockSpec((C2, L), lambda b: (0, b)),
        scratch_shapes=[
            pltpu.VMEM((k * k * C0, L), jnp.bfloat16),   # P1: conv1 full im2col
            pltpu.VMEM((C1, LX2), jnp.bfloat16),         # layer-2 padded frame
            pltpu.VMEM((k * C1, MZ), jnp.bfloat16),      # P2: conv2 kx-im2col
            pltpu.VMEM((k * C2, MZ), jnp.float32),       # Z2: conv2 per-ky partials
        ],
        compiler_params=pltpu.CompilerParams(
            dimension_semantics=("parallel",),
            vmem_limit_bytes=vmem_limit),
    )(xf, w1_2d, b1c, w2_2d, b2c, mask)

    # Tiny final extraction: flat padded frames -> NHWC (== .permute(0,2,3,1)).
    out = out_flat.reshape(C2, G, NB, s_stride)[:, :, :, :S]
    out = out.reshape(C2, N, Hp, Wp)[:, :, :H, :W]
    return jnp.transpose(out, (1, 2, 3, 0))


def init_aligner_params(key, fms=(2, 16, 2), k=7):
    """Deterministic parameter init matching PyTorch Conv2d defaults
    (kaiming_uniform(a=sqrt(5)) -> U(-1/sqrt(fan_in), 1/sqrt(fan_in)));
    initc_mult = 1.0 leaves weights unchanged.  Stored in HWIO layout."""
    params = []
    for i in range(len(fms) - 1):
        cin, cout = fms[i], fms[i + 1]
        fan_in = cin * k * k
        bound = 1.0 / math.sqrt(fan_in)
        key, kw, kb = jax.random.split(key, 3)
        w = jax.random.uniform(kw, (k, k, cin, cout), jnp.float32, -bound, bound)
        b = jax.random.uniform(kb, (cout,), jnp.float32, -bound, bound)
        params.append((w, b))
    return params


def _reference_forward(x_nchw, params, *, k=7):
    """Pure-JAX f32 reference (lax conv) for correctness checking."""
    pad = (k - 1) // 2
    x = x_nchw
    n_layers = len(params)
    for i, (w, b) in enumerate(params):
        w_oihw = jnp.transpose(w, (3, 2, 0, 1))  # HWIO -> OIHW
        x = jax.lax.conv_general_dilated(
            x, w_oihw, window_strides=(1, 1),
            padding=[(pad, pad), (pad, pad)],
            dimension_numbers=("NCHW", "OIHW", "NCHW"))
        x = x + b[None, :, None, None]
        if i != n_layers - 1:
            x = jnp.where(x >= 0, x, 0.01 * x)
    return jnp.transpose(x, (0, 2, 3, 1))  # permute(0, 2, 3, 1)


if __name__ == "__main__":
    key = jax.random.PRNGKey(0)
    key, kx = jax.random.split(key)

    # Aligner expects 2 input channels (src, tgt stacked); small spatial size.
    N, C, H, W = 2, 2, 16, 16
    x = jax.random.normal(kx, (N, C, H, W), jnp.float32)

    params = init_aligner_params(key, fms=(2, 16, 2), k=7)

    fwd = jax.jit(aligner_forward)
    out = jax.block_until_ready(fwd(x, params))

    ref = jax.block_until_ready(_reference_forward(x, params, k=7))
    assert out.shape == (N, H, W, 2), out.shape
    # bf16 matmul operands + f32 accumulation vs. the pure-f32 reference.
    assert jnp.allclose(out, ref, atol=2e-2, rtol=2e-2), (
        float(jnp.max(jnp.abs(out - ref))))

    print("KERNEL_OK")
</pallas_src>

<mosaic_0001>
module attributes {stable_mosaic.version = 11 : i64} {
  func.func @_aligner_kernel(%arg0: i32, %arg1: memref<1x2x768xbf16, #tpu.memory_space<vmem>>, %arg2: memref<16x98xbf16, #tpu.memory_space<vmem>>, %arg3: memref<16x1xf32, #tpu.memory_space<vmem>>, %arg4: memref<14x112xbf16, #tpu.memory_space<vmem>>, %arg5: memref<2x1xf32, #tpu.memory_space<vmem>>, %arg6: memref<1x512xf32, #tpu.memory_space<vmem>>, %arg7: memref<2x512xf32, #tpu.memory_space<vmem>>, %arg8: memref<98x512xbf16, #tpu.memory_space<vmem>>, %arg9: memref<16x896xbf16, #tpu.memory_space<vmem>>, %arg10: memref<112x768xbf16, #tpu.memory_space<vmem>>, %arg11: memref<14x768xf32, #tpu.memory_space<vmem>>) attributes {dimension_semantics = [#tpu.dimension_semantics<parallel>], iteration_bounds = array<i64: 2>, scalar_prefetch = 0 : i64, scratch_operands = 4 : i64, tpu.core_type = #tpu.core_type<tc>, window_params = [{transform_indices = @transform_0, window_bounds = array<i64: 1, 2, 768>}, {pipeline_mode = #tpu.pipeline_mode<synchronous>, transform_indices = @transform_1, window_bounds = array<i64: 16, 98>}, {pipeline_mode = #tpu.pipeline_mode<synchronous>, transform_indices = @transform_2, window_bounds = array<i64: 16, 1>}, {pipeline_mode = #tpu.pipeline_mode<synchronous>, transform_indices = @transform_3, window_bounds = array<i64: 14, 112>}, {pipeline_mode = #tpu.pipeline_mode<synchronous>, transform_indices = @transform_4, window_bounds = array<i64: 2, 1>}, {pipeline_mode = #tpu.pipeline_mode<synchronous>, transform_indices = @transform_5, window_bounds = array<i64: 1, 512>}, {transform_indices = @transform_6, window_bounds = array<i64: 2, 512>}]} {
    %c0 = arith.constant 0 : index
    %c0_0 = arith.constant 0 : index
    %c0_1 = arith.constant 0 : index
    %0 = vector.load %arg1[%c0, %c0_0, %c0_1] : memref<1x2x768xbf16, #tpu.memory_space<vmem>>, vector<1x2x768xbf16>
    %1 = vector.shape_cast %0 : vector<1x2x768xbf16> to vector<2x768xbf16>
    %2 = vector.extract_strided_slice %1 {offsets = [0, 0], sizes = [2, 512], strides = [1, 1]} : vector<2x768xbf16> to vector<2x512xbf16>
    %c0_2 = arith.constant 0 : index
    %c0_3 = arith.constant 0 : index
    %3 = vector.load %arg8[%c0_2, %c0_3] : memref<98x512xbf16, #tpu.memory_space<vmem>>, vector<2x512xbf16>
    tpu.vector_store %arg8[%c0_2, %c0_3], %2 {strides = array<i32>} : memref<98x512xbf16, #tpu.memory_space<vmem>>, vector<2x512xbf16>,
    %4 = vector.extract_strided_slice %1 {offsets = [0, 1], sizes = [2, 512], strides = [1, 1]} : vector<2x768xbf16> to vector<2x512xbf16>
    %c2 = arith.constant 2 : index
    %c0_4 = arith.constant 0 : index
    %5 = vector.load %arg8[%c2, %c0_4] : memref<98x512xbf16, #tpu.memory_space<vmem>>, vector<2x512xbf16>
    tpu.vector_store %arg8[%c2, %c0_4], %4 {strides = array<i32>} : memref<98x512xbf16, #tpu.memory_space<vmem>>, vector<2x512xbf16>,
    %6 = vector.extract_strided_slice %1 {offsets = [0, 2], sizes = [2, 512], strides = [1, 1]} : vector<2x768xbf16> to vector<2x512xbf16>
    %c4 = arith.constant 4 : index
    %c0_5 = arith.constant 0 : index
    %7 = vector.load %arg8[%c4, %c0_5] : memref<98x512xbf16, #tpu.memory_space<vmem>>, vector<2x512xbf16>
    tpu.vector_store %arg8[%c4, %c0_5], %6 {strides = array<i32>} : memref<98x512xbf16, #tpu.memory_space<vmem>>, vector<2x512xbf16>,
    %8 = vector.extract_strided_slice %1 {offsets = [0, 3], sizes = [2, 512], strides = [1, 1]} : vector<2x768xbf16> to vector<2x512xbf16>
    %c6 = arith.constant 6 : index
    %c0_6 = arith.constant 0 : index
    %9 = vector.load %arg8[%c6, %c0_6] : memref<98x512xbf16, #tpu.memory_space<vmem>>, vector<2x512xbf16>
    tpu.vector_store %arg8[%c6, %c0_6], %8 {strides = array<i32>} : memref<98x512xbf16, #tpu.memory_space<vmem>>, vector<2x512xbf16>,
    %10 = vector.extract_strided_slice %1 {offsets = [0, 4], sizes = [2, 512], strides = [1, 1]} : vector<2x768xbf16> to vector<2x512xbf16>
    %c8 = arith.constant 8 : index
    %c0_7 = arith.constant 0 : index
    %11 = vector.load %arg8[%c8, %c0_7] : memref<98x512xbf16, #tpu.memory_space<vmem>>, vector<2x512xbf16>
    tpu.vector_store %arg8[%c8, %c0_7], %10 {strides = array<i32>} : memref<98x512xbf16, #tpu.memory_space<vmem>>, vector<2x512xbf16>,
    %12 = vector.extract_strided_slice %1 {offsets = [0, 5], sizes = [2, 512], strides = [1, 1]} : vector<2x768xbf16> to vector<2x512xbf16>
    %c10 = arith.constant 10 : index
    %c0_8 = arith.constant 0 : index
    %13 = vector.load %arg8[%c10, %c0_8] : memref<98x512xbf16, #tpu.memory_space<vmem>>, vector<2x512xbf16>
    tpu.vector_store %arg8[%c10, %c0_8], %12 {strides = array<i32>} : memref<98x512xbf16, #tpu.memory_space<vmem>>, vector<2x512xbf16>,
    %14 = vector.extract_strided_slice %1 {offsets = [0, 6], sizes = [2, 512], strides = [1, 1]} : vector<2x768xbf16> to vector<2x512xbf16>
    %c12 = arith.constant 12 : index
    %c0_9 = arith.constant 0 : index
    %15 = vector.load %arg8[%c12, %c0_9] : memref<98x512xbf16, #tpu.memory_space<vmem>>, vector<2x512xbf16>
    tpu.vector_store %arg8[%c12, %c0_9], %14 {strides = array<i32>} : memref<98x512xbf16, #tpu.memory_space<vmem>>, vector<2x512xbf16>,
    %16 = vector.extract_strided_slice %1 {offsets = [0, 22], sizes = [2, 512], strides = [1, 1]} : vector<2x768xbf16> to vector<2x512xbf16>
    %c14 = arith.constant 14 : index
    %c0_10 = arith.constant 0 : index
    %17 = vector.load %arg8[%c14, %c0_10] : memref<98x512xbf16, #tpu.memory_space<vmem>>, vector<2x512xbf16>
    tpu.vector_store %arg8[%c14, %c0_10], %16 {strides = array<i32>} : memref<98x512xbf16, #tpu.memory_space<vmem>>, vector<2x512xbf16>,
    %18 = vector.extract_strided_slice %1 {offsets = [0, 23], sizes = [2, 512], strides = [1, 1]} : vector<2x768xbf16> to vector<2x512xbf16>
    %c16 = arith.constant 16 : index
    %c0_11 = arith.constant 0 : index
    %19 = vector.load %arg8[%c16, %c0_11] : memref<98x512xbf16, #tpu.memory_space<vmem>>, vector<2x512xbf16>
    tpu.vector_store %arg8[%c16, %c0_11], %18 {strides = array<i32>} : memref<98x512xbf16, #tpu.memory_space<vmem>>, vector<2x512xbf16>,
    %20 = vector.extract_strided_slice %1 {offsets = [0, 24], sizes = [2, 512], strides = [1, 1]} : vector<2x768xbf16> to vector<2x512xbf16>
    %c18 = arith.constant 18 : index
    %c0_12 = arith.constant 0 : index
    %21 = vector.load %arg8[%c18, %c0_12] : memref<98x512xbf16, #tpu.memory_space<vmem>>, vector<2x512xbf16>
    tpu.vector_store %arg8[%c18, %c0_12], %20 {strides = array<i32>} : memref<98x512xbf16, #tpu.memory_space<vmem>>, vector<2x512xbf16>,
    %22 = vector.extract_strided_slice %1 {offsets = [0, 25], sizes = [2, 512], strides = [1, 1]} : vector<2x768xbf16> to vector<2x512xbf16>
    %c20 = arith.constant 20 : index
    %c0_13 = arith.constant 0 : index
    %23 = vector.load %arg8[%c20, %c0_13] : memref<98x512xbf16, #tpu.memory_space<vmem>>, vector<2x512xbf16>
    tpu.vector_store %arg8[%c20, %c0_13], %22 {strides = array<i32>} : memref<98x512xbf16, #tpu.memory_space<vmem>>, vector<2x512xbf16>,
    %24 = vector.extract_strided_slice %1 {offsets = [0, 26], sizes = [2, 512], strides = [1, 1]} : vector<2x768xbf16> to vector<2x512xbf16>
    %c22 = arith.constant 22 : index
    %c0_14 = arith.constant 0 : index
    %25 = vector.load %arg8[%c22, %c0_14] : memref<98x512xbf16, #tpu.memory_space<vmem>>, vector<2x512xbf16>
    tpu.vector_store %arg8[%c22, %c0_14], %24 {strides = array<i32>} : memref<98x512xbf16, #tpu.memory_space<vmem>>, vector<2x512xbf16>,
    %26 = vector.extract_strided_slice %1 {offsets = [0, 27], sizes = [2, 512], strides = [1, 1]} : vector<2x768xbf16> to vector<2x512xbf16>
    %c24 = arith.constant 24 : index
    %c0_15 = arith.constant 0 : index
    %27 = vector.load %arg8[%c24, %c0_15] : memref<98x512xbf16, #tpu.memory_space<vmem>>, vector<2x512xbf16>
    tpu.vector_store %arg8[%c24, %c0_15], %26 {strides = array<i32>} : memref<98x512xbf16, #tpu.memory_space<vmem>>, vector<2x512xbf16>,
    %28 = vector.extract_strided_slice %1 {offsets = [0, 28], sizes = [2, 512], strides = [1, 1]} : vector<2x768xbf16> to vector<2x512xbf16>
    %c26 = arith.constant 26 : index
    %c0_16 = arith.constant 0 : index
    %29 = vector.load %arg8[%c26, %c0_16] : memref<98x512xbf16, #tpu.memory_space<vmem>>, vector<2x512xbf16>
    tpu.vector_store %arg8[%c26, %c0_16], %28 {strides = array<i32>} : memref<98x512xbf16, #tpu.memory_space<vmem>>, vector<2x512xbf16>,
    %30 = vector.extract_strided_slice %1 {offsets = [0, 44], sizes = [2, 512], strides = [1, 1]} : vector<2x768xbf16> to vector<2x512xbf16>
    %c28 = arith.constant 28 : index
    %c0_17 = arith.constant 0 : index
    %31 = vector.load %arg8[%c28, %c0_17] : memref<98x512xbf16, #tpu.memory_space<vmem>>, vector<2x512xbf16>
    tpu.vector_store %arg8[%c28, %c0_17], %30 {strides = array<i32>} : memref<98x512xbf16, #tpu.memory_space<vmem>>, vector<2x512xbf16>,
    %32 = vector.extract_strided_slice %1 {offsets = [0, 45], sizes = [2, 512], strides = [1, 1]} : vector<2x768xbf16> to vector<2x512xbf16>
    %c30 = arith.constant 30 : index
    %c0_18 = arith.constant 0 : index
    %33 = vector.load %arg8[%c30, %c0_18] : memref<98x512xbf16, #tpu.memory_space<vmem>>, vector<2x512xbf16>
    tpu.vector_store %arg8[%c30, %c0_18], %32 {strides = array<i32>} : memref<98x512xbf16, #tpu.memory_space<vmem>>, vector<2x512xbf16>,
    %34 = vector.extract_strided_slice %1 {offsets = [0, 46], sizes = [2, 512], strides = [1, 1]} : vector<2x768xbf16> to vector<2x512xbf16>
    %c32 = arith.constant 32 : index
    %c0_19 = arith.constant 0 : index
    %35 = vector.load %arg8[%c32, %c0_19] : memref<98x512xbf16, #tpu.memory_space<vmem>>, vector<2x512xbf16>
    tpu.vector_store %arg8[%c32, %c0_19], %34 {strides = array<i32>} : memref<98x512xbf16, #tpu.memory_space<vmem>>, vector<2x512xbf16>,
    %36 = vector.extract_strided_slice %1 {offsets = [0, 47], sizes = [2, 512], strides = [1, 1]} : vector<2x768xbf16> to vector<2x512xbf16>
    %c34 = arith.constant 34 : index
    %c0_20 = arith.constant 0 : index
    %37 = vector.load %arg8[%c34, %c0_20] : memref<98x512xbf16, #tpu.memory_space<vmem>>, vector<2x512xbf16>
    tpu.vector_store %arg8[%c34, %c0_20], %36 {strides = array<i32>} : memref<98x512xbf16, #tpu.memory_space<vmem>>, vector<2x512xbf16>,
    %38 = vector.extract_strided_slice %1 {offsets = [0, 48], sizes = [2, 512], strides = [1, 1]} : vector<2x768xbf16> to vector<2x512xbf16>
    %c36 = arith.constant 36 : index
    %c0_21 = arith.constant 0 : index
    %39 = vector.load %arg8[%c36, %c0_21] : memref<98x512xbf16, #tpu.memory_space<vmem>>, vector<2x512xbf16>
    tpu.vector_store %arg8[%c36, %c0_21], %38 {strides = array<i32>} : memref<98x512xbf16, #tpu.memory_space<vmem>>, vector<2x512xbf16>,
    %40 = vector.extract_strided_slice %1 {offsets = [0, 49], sizes = [2, 512], strides = [1, 1]} : vector<2x768xbf16> to vector<2x512xbf16>
    %c38 = arith.constant 38 : index
    %c0_22 = arith.constant 0 : index
    %41 = vector.load %arg8[%c38, %c0_22] : memref<98x512xbf16, #tpu.memory_space<vmem>>, vector<2x512xbf16>
    tpu.vector_store %arg8[%c38, %c0_22], %40 {strides = array<i32>} : memref<98x512xbf16, #tpu.memory_space<vmem>>, vector<2x512xbf16>,
    %42 = vector.extract_strided_slice %1 {offsets = [0, 50], sizes = [2, 512], strides = [1, 1]} : vector<2x768xbf16> to vector<2x512xbf16>
    %c40 = arith.constant 40 : index
    %c0_23 = arith.constant 0 : index
    %43 = vector.load %arg8[%c40, %c0_23] : memref<98x512xbf16, #tpu.memory_space<vmem>>, vector<2x512xbf16>
    tpu.vector_store %arg8[%c40, %c0_23], %42 {strides = array<i32>} : memref<98x512xbf16, #tpu.memory_space<vmem>>, vector<2x512xbf16>,
    %44 = vector.extract_strided_slice %1 {offsets = [0, 66], sizes = [2, 512], strides = [1, 1]} : vector<2x768xbf16> to vector<2x512xbf16>
    %c42 = arith.constant 42 : index
    %c0_24 = arith.constant 0 : index
    %45 = vector.load %arg8[%c42, %c0_24] : memref<98x512xbf16, #tpu.memory_space<vmem>>, vector<2x512xbf16>
    tpu.vector_store %arg8[%c42, %c0_24], %44 {strides = array<i32>} : memref<98x512xbf16, #tpu.memory_space<vmem>>, vector<2x512xbf16>,
    %46 = vector.extract_strided_slice %1 {offsets = [0, 67], sizes = [2, 512], strides = [1, 1]} : vector<2x768xbf16> to vector<2x512xbf16>
    %c44 = arith.constant 44 : index
    %c0_25 = arith.constant 0 : index
    %47 = vector.load %arg8[%c44, %c0_25] : memref<98x512xbf16, #tpu.memory_space<vmem>>, vector<2x512xbf16>
    tpu.vector_store %arg8[%c44, %c0_25], %46 {strides = array<i32>} : memref<98x512xbf16, #tpu.memory_space<vmem>>, vector<2x512xbf16>,
    %48 = vector.extract_strided_slice %1 {offsets = [0, 68], sizes = [2, 512], strides = [1, 1]} : vector<2x768xbf16> to vector<2x512xbf16>
    %c46 = arith.constant 46 : index
    %c0_26 = arith.constant 0 : index
    %49 = vector.load %arg8[%c46, %c0_26] : memref<98x512xbf16, #tpu.memory_space<vmem>>, vector<2x512xbf16>
    tpu.vector_store %arg8[%c46, %c0_26], %48 {strides = array<i32>} : memref<98x512xbf16, #tpu.memory_space<vmem>>, vector<2x512xbf16>,
    %50 = vector.extract_strided_slice %1 {offsets = [0, 69], sizes = [2, 512], strides = [1, 1]} : vector<2x768xbf16> to vector<2x512xbf16>
    %c48 = arith.constant 48 : index
    %c0_27 = arith.constant 0 : index
    %51 = vector.load %arg8[%c48, %c0_27] : memref<98x512xbf16, #tpu.memory_space<vmem>>, vector<2x512xbf16>
    tpu.vector_store %arg8[%c48, %c0_27], %50 {strides = array<i32>} : memref<98x512xbf16, #tpu.memory_space<vmem>>, vector<2x512xbf16>,
    %52 = vector.extract_strided_slice %1 {offsets = [0, 70], sizes = [2, 512], strides = [1, 1]} : vector<2x768xbf16> to vector<2x512xbf16>
    %c50 = arith.constant 50 : index
    %c0_28 = arith.constant 0 : index
    %53 = vector.load %arg8[%c50, %c0_28] : memref<98x512xbf16, #tpu.memory_space<vmem>>, vector<2x512xbf16>
    tpu.vector_store %arg8[%c50, %c0_28], %52 {strides = array<i32>} : memref<98x512xbf16, #tpu.memory_space<vmem>>, vector<2x512xbf16>,
    %54 = vector.extract_strided_slice %1 {offsets = [0, 71], sizes = [2, 512], strides = [1, 1]} : vector<2x768xbf16> to vector<2x512xbf16>
    %c52 = arith.constant 52 : index
    %c0_29 = arith.constant 0 : index
    %55 = vector.load %arg8[%c52, %c0_29] : memref<98x512xbf16, #tpu.memory_space<vmem>>, vector<2x512xbf16>
    tpu.vector_store %arg8[%c52, %c0_29], %54 {strides = array<i32>} : memref<98x512xbf16, #tpu.memory_space<vmem>>, vector<2x512xbf16>,
    %56 = vector.extract_strided_slice %1 {offsets = [0, 72], sizes = [2, 512], strides = [1, 1]} : vector<2x768xbf16> to vector<2x512xbf16>
    %c54 = arith.constant 54 : index
    %c0_30 = arith.constant 0 : index
    %57 = vector.load %arg8[%c54, %c0_30] : memref<98x512xbf16, #tpu.memory_space<vmem>>, vector<2x512xbf16>
    tpu.vector_store %arg8[%c54, %c0_30], %56 {strides = array<i32>} : memref<98x512xbf16, #tpu.memory_space<vmem>>, vector<2x512xbf16>,
    %58 = vector.extract_strided_slice %1 {offsets = [0, 88], sizes = [2, 512], strides = [1, 1]} : vector<2x768xbf16> to vector<2x512xbf16>
    %c56 = arith.constant 56 : index
    %c0_31 = arith.constant 0 : index
    %59 = vector.load %arg8[%c56, %c0_31] : memref<98x512xbf16, #tpu.memory_space<vmem>>, vector<2x512xbf16>
    tpu.vector_store %arg8[%c56, %c0_31], %58 {strides = array<i32>} : memref<98x512xbf16, #tpu.memory_space<vmem>>, vector<2x512xbf16>,
    %60 = vector.extract_strided_slice %1 {offsets = [0, 89], sizes = [2, 512], strides = [1, 1]} : vector<2x768xbf16> to vector<2x512xbf16>
    %c58 = arith.constant 58 : index
    %c0_32 = arith.constant 0 : index
    %61 = vector.load %arg8[%c58, %c0_32] : memref<98x512xbf16, #tpu.memory_space<vmem>>, vector<2x512xbf16>
    tpu.vector_store %arg8[%c58, %c0_32], %60 {strides = array<i32>} : memref<98x512xbf16, #tpu.memory_space<vmem>>, vector<2x512xbf16>,
    %62 = vector.extract_strided_slice %1 {offsets = [0, 90], sizes = [2, 512], strides = [1, 1]} : vector<2x768xbf16> to vector<2x512xbf16>
    %c60 = arith.constant 60 : index
    %c0_33 = arith.constant 0 : index
    %63 = vector.load %arg8[%c60, %c0_33] : memref<98x512xbf16, #tpu.memory_space<vmem>>, vector<2x512xbf16>
    tpu.vector_store %arg8[%c60, %c0_33], %62 {strides = array<i32>} : memref<98x512xbf16, #tpu.memory_space<vmem>>, vector<2x512xbf16>,
    %64 = vector.extract_strided_slice %1 {offsets = [0, 91], sizes = [2, 512], strides = [1, 1]} : vector<2x768xbf16> to vector<2x512xbf16>
    %c62 = arith.constant 62 : index
    %c0_34 = arith.constant 0 : index
    %65 = vector.load %arg8[%c62, %c0_34] : memref<98x512xbf16, #tpu.memory_space<vmem>>, vector<2x512xbf16>
    tpu.vector_store %arg8[%c62, %c0_34], %64 {strides = array<i32>} : memref<98x512xbf16, #tpu.memory_space<vmem>>, vector<2x512xbf16>,
    %66 = vector.extract_strided_slice %1 {offsets = [0, 92], sizes = [2, 512], strides = [1, 1]} : vector<2x768xbf16> to vector<2x512xbf16>
    %c64 = arith.constant 64 : index
    %c0_35 = arith.constant 0 : index
    %67 = vector.load %arg8[%c64, %c0_35] : memref<98x512xbf16, #tpu.memory_space<vmem>>, vector<2x512xbf16>
    tpu.vector_store %arg8[%c64, %c0_35], %66 {strides = array<i32>} : memref<98x512xbf16, #tpu.memory_space<vmem>>, vector<2x512xbf16>,
    %68 = vector.extract_strided_slice %1 {offsets = [0, 93], sizes = [2, 512], strides = [1, 1]} : vector<2x768xbf16> to vector<2x512xbf16>
    %c66 = arith.constant 66 : index
    %c0_36 = arith.constant 0 : index
    %69 = vector.load %arg8[%c66, %c0_36] : memref<98x512xbf16, #tpu.memory_space<vmem>>, vector<2x512xbf16>
    tpu.vector_store %arg8[%c66, %c0_36], %68 {strides = array<i32>} : memref<98x512xbf16, #tpu.memory_space<vmem>>, vector<2x512xbf16>,
    %70 = vector.extract_strided_slice %1 {offsets = [0, 94], sizes = [2, 512], strides = [1, 1]} : vector<2x768xbf16> to vector<2x512xbf16>
    %c68 = arith.constant 68 : index
    %c0_37 = arith.constant 0 : index
    %71 = vector.load %arg8[%c68, %c0_37] : memref<98x512xbf16, #tpu.memory_space<vmem>>, vector<2x512xbf16>
    tpu.vector_store %arg8[%c68, %c0_37], %70 {strides = array<i32>} : memref<98x512xbf16, #tpu.memory_space<vmem>>, vector<2x512xbf16>,
    %72 = vector.extract_strided_slice %1 {offsets = [0, 110], sizes = [2, 512], strides = [1, 1]} : vector<2x768xbf16> to vector<2x512xbf16>
    %c70 = arith.constant 70 : index
    %c0_38 = arith.constant 0 : index
    %73 = vector.load %arg8[%c70, %c0_38] : memref<98x512xbf16, #tpu.memory_space<vmem>>, vector<2x512xbf16>
    tpu.vector_store %arg8[%c70, %c0_38], %72 {strides = array<i32>} : memref<98x512xbf16, #tpu.memory_space<vmem>>, vector<2x512xbf16>,
    %74 = vector.extract_strided_slice %1 {offsets = [0, 111], sizes = [2, 512], strides = [1, 1]} : vector<2x768xbf16> to vector<2x512xbf16>
    %c72 = arith.constant 72 : index
    %c0_39 = arith.constant 0 : index
    %75 = vector.load %arg8[%c72, %c0_39] : memref<98x512xbf16, #tpu.memory_space<vmem>>, vector<2x512xbf16>
    tpu.vector_store %arg8[%c72, %c0_39], %74 {strides = array<i32>} : memref<98x512xbf16, #tpu.memory_space<vmem>>, vector<2x512xbf16>,
    %76 = vector.extract_strided_slice %1 {offsets = [0, 112], sizes = [2, 512], strides = [1, 1]} : vector<2x768xbf16> to vector<2x512xbf16>
    %c74 = arith.constant 74 : index
    %c0_40 = arith.constant 0 : index
    %77 = vector.load %arg8[%c74, %c0_40] : memref<98x512xbf16, #tpu.memory_space<vmem>>, vector<2x512xbf16>
    tpu.vector_store %arg8[%c74, %c0_40], %76 {strides = array<i32>} : memref<98x512xbf16, #tpu.memory_space<vmem>>, vector<2x512xbf16>,
    %78 = vector.extract_strided_slice %1 {offsets = [0, 113], sizes = [2, 512], strides = [1, 1]} : vector<2x768xbf16> to vector<2x512xbf16>
    %c76 = arith.constant 76 : index
    %c0_41 = arith.constant 0 : index
    %79 = vector.load %arg8[%c76, %c0_41] : memref<98x512xbf16, #tpu.memory_space<vmem>>, vector<2x512xbf16>
    tpu.vector_store %arg8[%c76, %c0_41], %78 {strides = array<i32>} : memref<98x512xbf16, #tpu.memory_space<vmem>>, vector<2x512xbf16>,
    %80 = vector.extract_strided_slice %1 {offsets = [0, 114], sizes = [2, 512], strides = [1, 1]} : vector<2x768xbf16> to vector<2x512xbf16>
    %c78 = arith.constant 78 : index
    %c0_42 = arith.constant 0 : index
    %81 = vector.load %arg8[%c78, %c0_42] : memref<98x512xbf16, #tpu.memory_space<vmem>>, vector<2x512xbf16>
    tpu.vector_store %arg8[%c78, %c0_42], %80 {strides = array<i32>} : memref<98x512xbf16, #tpu.memory_space<vmem>>, vector<2x512xbf16>,
    %82 = vector.extract_strided_slice %1 {offsets = [0, 115], sizes = [2, 512], strides = [1, 1]} : vector<2x768xbf16> to vector<2x512xbf16>
    %c80 = arith.constant 80 : index
    %c0_43 = arith.constant 0 : index
    %83 = vector.load %arg8[%c80, %c0_43] : memref<98x512xbf16, #tpu.memory_space<vmem>>, vector<2x512xbf16>
    tpu.vector_store %arg8[%c80, %c0_43], %82 {strides = array<i32>} : memref<98x512xbf16, #tpu.memory_space<vmem>>, vector<2x512xbf16>,
    %84 = vector.extract_strided_slice %1 {offsets = [0, 116], sizes = [2, 512], strides = [1, 1]} : vector<2x768xbf16> to vector<2x512xbf16>
    %c82 = arith.constant 82 : index
    %c0_44 = arith.constant 0 : index
    %85 = vector.load %arg8[%c82, %c0_44] : memref<98x512xbf16, #tpu.memory_space<vmem>>, vector<2x512xbf16>
    tpu.vector_store %arg8[%c82, %c0_44], %84 {strides = array<i32>} : memref<98x512xbf16, #tpu.memory_space<vmem>>, vector<2x512xbf16>,
    %86 = vector.extract_strided_slice %1 {offsets = [0, 132], sizes = [2, 512], strides = [1, 1]} : vector<2x768xbf16> to vector<2x512xbf16>
    %c84 = arith.constant 84 : index
    %c0_45 = arith.constant 0 : index
    %87 = vector.load %arg8[%c84, %c0_45] : memref<98x512xbf16, #tpu.memory_space<vmem>>, vector<2x512xbf16>
    tpu.vector_store %arg8[%c84, %c0_45], %86 {strides = array<i32>} : memref<98x512xbf16, #tpu.memory_space<vmem>>, vector<2x512xbf16>,
    %88 = vector.extract_strided_slice %1 {offsets = [0, 133], sizes = [2, 512], strides = [1, 1]} : vector<2x768xbf16> to vector<2x512xbf16>
    %c86 = arith.constant 86 : index
    %c0_46 = arith.constant 0 : index
    %89 = vector.load %arg8[%c86, %c0_46] : memref<98x512xbf16, #tpu.memory_space<vmem>>, vector<2x512xbf16>
    tpu.vector_store %arg8[%c86, %c0_46], %88 {strides = array<i32>} : memref<98x512xbf16, #tpu.memory_space<vmem>>, vector<2x512xbf16>,
    %90 = vector.extract_strided_slice %1 {offsets = [0, 134], sizes = [2, 512], strides = [1, 1]} : vector<2x768xbf16> to vector<2x512xbf16>
    %c88 = arith.constant 88 : index
    %c0_47 = arith.constant 0 : index
    %91 = vector.load %arg8[%c88, %c0_47] : memref<98x512xbf16, #tpu.memory_space<vmem>>, vector<2x512xbf16>
    tpu.vector_store %arg8[%c88, %c0_47], %90 {strides = array<i32>} : memref<98x512xbf16, #tpu.memory_space<vmem>>, vector<2x512xbf16>,
    %92 = vector.extract_strided_slice %1 {offsets = [0, 135], sizes = [2, 512], strides = [1, 1]} : vector<2x768xbf16> to vector<2x512xbf16>
    %c90 = arith.constant 90 : index
    %c0_48 = arith.constant 0 : index
    %93 = vector.load %arg8[%c90, %c0_48] : memref<98x512xbf16, #tpu.memory_space<vmem>>, vector<2x512xbf16>
    tpu.vector_store %arg8[%c90, %c0_48], %92 {strides = array<i32>} : memref<98x512xbf16, #tpu.memory_space<vmem>>, vector<2x512xbf16>,
    %94 = vector.extract_strided_slice %1 {offsets = [0, 136], sizes = [2, 512], strides = [1, 1]} : vector<2x768xbf16> to vector<2x512xbf16>
    %c92 = arith.constant 92 : index
    %c0_49 = arith.constant 0 : index
    %95 = vector.load %arg8[%c92, %c0_49] : memref<98x512xbf16, #tpu.memory_space<vmem>>, vector<2x512xbf16>
    tpu.vector_store %arg8[%c92, %c0_49], %94 {strides = array<i32>} : memref<98x512xbf16, #tpu.memory_space<vmem>>, vector<2x512xbf16>,
    %96 = vector.extract_strided_slice %1 {offsets = [0, 137], sizes = [2, 512], strides = [1, 1]} : vector<2x768xbf16> to vector<2x512xbf16>
    %c94 = arith.constant 94 : index
    %c0_50 = arith.constant 0 : index
    %97 = vector.load %arg8[%c94, %c0_50] : memref<98x512xbf16, #tpu.memory_space<vmem>>, vector<2x512xbf16>
    tpu.vector_store %arg8[%c94, %c0_50], %96 {strides = array<i32>} : memref<98x512xbf16, #tpu.memory_space<vmem>>, vector<2x512xbf16>,
    %98 = vector.extract_strided_slice %1 {offsets = [0, 138], sizes = [2, 512], strides = [1, 1]} : vector<2x768xbf16> to vector<2x512xbf16>
    %c96 = arith.constant 96 : index
    %c0_51 = arith.constant 0 : index
    %99 = vector.load %arg8[%c96, %c0_51] : memref<98x512xbf16, #tpu.memory_space<vmem>>, vector<2x512xbf16>
    tpu.vector_store %arg8[%c96, %c0_51], %98 {strides = array<i32>} : memref<98x512xbf16, #tpu.memory_space<vmem>>, vector<2x512xbf16>,
    %c0_52 = arith.constant 0 : index
    %c0_53 = arith.constant 0 : index
    %100 = vector.load %arg2[%c0_52, %c0_53] : memref<16x98xbf16, #tpu.memory_space<vmem>>, vector<16x98xbf16>
    %c0_54 = arith.constant 0 : index
    %c0_55 = arith.constant 0 : index
    %101 = vector.load %arg8[%c0_54, %c0_55] : memref<98x512xbf16, #tpu.memory_space<vmem>>, vector<98x512xbf16>
    %cst = arith.constant dense<0.000000e+00> : vector<16x512xf32>
    %102 = tpu.matmul %100, %101, %cst {dimension_numbers = #tpu.dot_dimension_numbers<[1], [0], [0], [1], [0, 0, 1, 1], [], []>} : vector<16x98xbf16>, vector<98x512xbf16>, vector<16x512xf32> -> vector<16x512xf32>
    %c0_56 = arith.constant 0 : index
    %c0_57 = arith.constant 0 : index
    %103 = vector.load %arg3[%c0_56, %c0_57] : memref<16x1xf32, #tpu.memory_space<vmem>>, vector<16x1xf32>
    %104 = vector.broadcast %103 : vector<16x1xf32> to vector<16x512xf32>
    %105 = arith.addf %102, %104 : vector<16x512xf32>
    %cst_58 = arith.constant 0.00999999977 : f32
    %106 = vector.broadcast %cst_58 : f32 to vector<16x512xf32>
    %107 = arith.mulf %106, %105 : vector<16x512xf32>
    %108 = arith.maximumf %105, %107 : vector<16x512xf32>
    %c0_59 = arith.constant 0 : index
    %c0_60 = arith.constant 0 : index
    %109 = vector.load %arg6[%c0_59, %c0_60] : memref<1x512xf32, #tpu.memory_space<vmem>>, vector<1x512xf32>
    %110 = vector.broadcast %109 : vector<1x512xf32> to vector<16x512xf32>
    %111 = arith.mulf %108, %110 : vector<16x512xf32>
    %cst_61 = arith.constant 0.000000e+00 : bf16
    %112 = vector.broadcast %cst_61 : bf16 to vector<16x128xbf16>
    %c0_62 = arith.constant 0 : index
    %c0_63 = arith.constant 0 : index
    %113 = vector.load %arg9[%c0_62, %c0_63] : memref<16x896xbf16, #tpu.memory_space<vmem>>, vector<16x128xbf16>
    tpu.vector_store %arg9[%c0_62, %c0_63], %112 {strides = array<i32>} : memref<16x896xbf16, #tpu.memory_space<vmem>>, vector<16x128xbf16>,
    %cst_64 = arith.constant 0.000000e+00 : bf16
    %114 = vector.broadcast %cst_64 : bf16 to vector<16x256xbf16>
    %c0_65 = arith.constant 0 : index
    %c640 = arith.constant 640 : index
    %115 = vector.load %arg9[%c0_65, %c640] : memref<16x896xbf16, #tpu.memory_space<vmem>>, vector<16x256xbf16>
    tpu.vector_store %arg9[%c0_65, %c640], %114 {strides = array<i32>} : memref<16x896xbf16, #tpu.memory_space<vmem>>, vector<16x256xbf16>,
    %116 = arith.truncf %111 : vector<16x512xf32> to vector<16x512xbf16>
    %c0_66 = arith.constant 0 : index
    %c128 = arith.constant 128 : index
    %117 = vector.load %arg9[%c0_66, %c128] : memref<16x896xbf16, #tpu.memory_space<vmem>>, vector<16x512xbf16>
    tpu.vector_store %arg9[%c0_66, %c128], %116 {strides = array<i32>} : memref<16x896xbf16, #tpu.memory_space<vmem>>, vector<16x512xbf16>,
    %c0_67 = arith.constant 0 : index
    %c59 = arith.constant 59 : index
    %118 = vector.load %arg9[%c0_67, %c59] : memref<16x896xbf16, #tpu.memory_space<vmem>>, vector<16x768xbf16>
    %c0_68 = arith.constant 0 : index
    %c0_69 = arith.constant 0 : index
    %119 = vector.load %arg10[%c0_68, %c0_69] : memref<112x768xbf16, #tpu.memory_space<vmem>>, vector<16x768xbf16>
    tpu.vector_store %arg10[%c0_68, %c0_69], %118 {strides = array<i32>} : memref<112x768xbf16, #tpu.memory_space<vmem>>, vector<16x768xbf16>,
    %c0_70 = arith.constant 0 : index
    %c60_71 = arith.constant 60 : index
    %120 = vector.load %arg9[%c0_70, %c60_71] : memref<16x896xbf16, #tpu.memory_space<vmem>>, vector<16x768xbf16>
    %c16_72 = arith.constant 16 : index
    %c0_73 = arith.constant 0 : index
    %121 = vector.load %arg10[%c16_72, %c0_73] : memref<112x768xbf16, #tpu.memory_space<vmem>>, vector<16x768xbf16>
    tpu.vector_store %arg10[%c16_72, %c0_73], %120 {strides = array<i32>} : memref<112x768xbf16, #tpu.memory_space<vmem>>, vector<16x768xbf16>,
    %c0_74 = arith.constant 0 : index
    %c61 = arith.constant 61 : index
    %122 = vector.load %arg9[%c0_74, %c61] : memref<16x896xbf16, #tpu.memory_space<vmem>>, vector<16x768xbf16>
    %c32_75 = arith.constant 32 : index
    %c0_76 = arith.constant 0 : index
    %123 = vector.load %arg10[%c32_75, %c0_76] : memref<112x768xbf16, #tpu.memory_space<vmem>>, vector<16x768xbf16>
    tpu.vector_store %arg10[%c32_75, %c0_76], %122 {strides = array<i32>} : memref<112x768xbf16, #tpu.memory_space<vmem>>, vector<16x768xbf16>,
    %c0_77 = arith.constant 0 : index
    %c62_78 = arith.constant 62 : index
    %124 = vector.load %arg9[%c0_77, %c62_78] : memref<16x896xbf16, #tpu.memory_space<vmem>>, vector<16x768xbf16>
    %c48_79 = arith.constant 48 : index
    %c0_80 = arith.constant 0 : index
    %125 = vector.load %arg10[%c48_79, %c0_80] : memref<112x768xbf16, #tpu.memory_space<vmem>>, vector<16x768xbf16>
    tpu.vector_store %arg10[%c48_79, %c0_80], %124 {strides = array<i32>} : memref<112x768xbf16, #tpu.memory_space<vmem>>, vector<16x768xbf16>,
    %c0_81 = arith.constant 0 : index
    %c63 = arith.constant 63 : index
    %126 = vector.load %arg9[%c0_81, %c63] : memref<16x896xbf16, #tpu.memory_space<vmem>>, vector<16x768xbf16>
    %c64_82 = arith.constant 64 : index
    %c0_83 = arith.constant 0 : index
    %127 = vector.load %arg10[%c64_82, %c0_83] : memref<112x768xbf16, #tpu.memory_space<vmem>>, vector<16x768xbf16>
    tpu.vector_store %arg10[%c64_82, %c0_83], %126 {strides = array<i32>} : memref<112x768xbf16, #tpu.memory_space<vmem>>, vector<16x768xbf16>,
    %c0_84 = arith.constant 0 : index
    %c64_85 = arith.constant 64 : index
    %128 = vector.load %arg9[%c0_84, %c64_85] : memref<16x896xbf16, #tpu.memory_space<vmem>>, vector<16x768xbf16>
    %c80_86 = arith.constant 80 : index
    %c0_87 = arith.constant 0 : index
    %129 = vector.load %arg10[%c80_86, %c0_87] : memref<112x768xbf16, #tpu.memory_space<vmem>>, vector<16x768xbf16>
    tpu.vector_store %arg10[%c80_86, %c0_87], %128 {strides = array<i32>} : memref<112x768xbf16, #tpu.memory_space<vmem>>, vector<16x768xbf16>,
    %c0_88 = arith.constant 0 : index
    %c65 = arith.constant 65 : index
    %130 = vector.load %arg9[%c0_88, %c65] : memref<16x896xbf16, #tpu.memory_space<vmem>>, vector<16x768xbf16>
    %c96_89 = arith.constant 96 : index
    %c0_90 = arith.constant 0 : index
    %131 = vector.load %arg10[%c96_89, %c0_90] : memref<112x768xbf16, #tpu.memory_space<vmem>>, vector<16x768xbf16>
    tpu.vector_store %arg10[%c96_89, %c0_90], %130 {strides = array<i32>} : memref<112x768xbf16, #tpu.memory_space<vmem>>, vector<16x768xbf16>,
    %c0_91 = arith.constant 0 : index
    %c0_92 = arith.constant 0 : index
    %132 = vector.load %arg4[%c0_91, %c0_92] : memref<14x112xbf16, #tpu.memory_space<vmem>>, vector<14x112xbf16>
    %c0_93 = arith.constant 0 : index
    %c0_94 = arith.constant 0 : index
    %133 = vector.load %arg10[%c0_93, %c0_94] : memref<112x768xbf16, #tpu.memory_space<vmem>>, vector<112x768xbf16>
    %cst_95 = arith.constant dense<0.000000e+00> : vector<14x768xf32>
    %134 = tpu.matmul %132, %133, %cst_95 {dimension_numbers = #tpu.dot_dimension_numbers<[1], [0], [0], [1], [0, 0, 1, 1], [], []>} : vector<14x112xbf16>, vector<112x768xbf16>, vector<14x768xf32> -> vector<14x768xf32>
    %c0_96 = arith.constant 0 : index
    %c0_97 = arith.constant 0 : index
    %135 = vector.load %arg11[%c0_96, %c0_97] : memref<14x768xf32, #tpu.memory_space<vmem>>, vector<14x768xf32>
    tpu.vector_store %arg11[%c0_96, %c0_97], %134 {strides = array<i32>} : memref<14x768xf32, #tpu.memory_space<vmem>>, vector<14x768xf32>,
    %c0_98 = arith.constant 0 : index
    %c0_99 = arith.constant 0 : index
    %136 = vector.load %arg11[%c0_98, %c0_99] : memref<14x768xf32, #tpu.memory_space<vmem>>, vector<2x512xf32>
    %c2_100 = arith.constant 2 : index
    %c22_101 = arith.constant 22 : index
    %137 = vector.load %arg11[%c2_100, %c22_101] : memref<14x768xf32, #tpu.memory_space<vmem>>, vector<2x512xf32>
    %138 = arith.addf %136, %137 : vector<2x512xf32>
    %c4_102 = arith.constant 4 : index
    %c44_103 = arith.constant 44 : index
    %139 = vector.load %arg11[%c4_102, %c44_103] : memref<14x768xf32, #tpu.memory_space<vmem>>, vector<2x512xf32>
    %140 = arith.addf %138, %139 : vector<2x512xf32>
    %c6_104 = arith.constant 6 : index
    %c66_105 = arith.constant 66 : index
    %141 = vector.load %arg11[%c6_104, %c66_105] : memref<14x768xf32, #tpu.memory_space<vmem>>, vector<2x512xf32>
    %142 = arith.addf %140, %141 : vector<2x512xf32>
    %c8_106 = arith.constant 8 : index
    %c88_107 = arith.constant 88 : index
    %143 = vector.load %arg11[%c8_106, %c88_107] : memref<14x768xf32, #tpu.memory_space<vmem>>, vector<2x512xf32>
    %144 = arith.addf %142, %143 : vector<2x512xf32>
    %c10_108 = arith.constant 10 : index
    %c110 = arith.constant 110 : index
    %145 = vector.load %arg11[%c10_108, %c110] : memref<14x768xf32, #tpu.memory_space<vmem>>, vector<2x512xf32>
    %146 = arith.addf %144, %145 : vector<2x512xf32>
    %c12_109 = arith.constant 12 : index
    %c132 = arith.constant 132 : index
    %147 = vector.load %arg11[%c12_109, %c132] : memref<14x768xf32, #tpu.memory_space<vmem>>, vector<2x512xf32>
    %148 = arith.addf %146, %147 : vector<2x512xf32>
    %c0_110 = arith.constant 0 : index
    %c0_111 = arith.constant 0 : index
    %149 = vector.load %arg5[%c0_110, %c0_111] : memref<2x1xf32, #tpu.memory_space<vmem>>, vector<2x1xf32>
    %150 = vector.broadcast %149 : vector<2x1xf32> to vector<2x512xf32>
    %151 = arith.addf %148, %150 : vector<2x512xf32>
    %c0_112 = arith.constant 0 : index
    %c0_113 = arith.constant 0 : index
    %152 = vector.load %arg7[%c0_112, %c0_113] : memref<2x512xf32, #tpu.memory_space<vmem>>, vector<2x512xf32>
    tpu.vector_store %arg7[%c0_112, %c0_113], %151 {strides = array<i32>} : memref<2x512xf32, #tpu.memory_space<vmem>>, vector<2x512xf32>,
    return
  }
  func.func @transform_0(%arg0: i32) -> (i32, i32, i32) {
    %c0_i32 = arith.constant 0 : i32
    %c0_i32_0 = arith.constant 0 : i32
    %c0_i32_1 = arith.constant 0 : i32
    return %arg0, %c0_i32, %c0_i32_0 : i32, i32, i32
  }
  func.func @transform_1(%arg0: i32) -> (i32, i32) {
    %c0_i32 = arith.constant 0 : i32
    %c0_i32_0 = arith.constant 0 : i32
    %c0_i32_1 = arith.constant 0 : i32
    return %c0_i32, %c0_i32_0 : i32, i32
  }
  func.func @transform_2(%arg0: i32) -> (i32, i32) {
    %c0_i32 = arith.constant 0 : i32
    %c0_i32_0 = arith.constant 0 : i32
    %c0_i32_1 = arith.constant 0 : i32
    return %c0_i32, %c0_i32_0 : i32, i32
  }
  func.func @transform_3(%arg0: i32) -> (i32, i32) {
    %c0_i32 = arith.constant 0 : i32
    %c0_i32_0 = arith.constant 0 : i32
    %c0_i32_1 = arith.constant 0 : i32
    return %c0_i32, %c0_i32_0 : i32, i32
  }
  func.func @transform_4(%arg0: i32) -> (i32, i32) {
    %c0_i32 = arith.constant 0 : i32
    %c0_i32_0 = arith.constant 0 : i32
    %c0_i32_1 = arith.constant 0 : i32
    return %c0_i32, %c0_i32_0 : i32, i32
  }
  func.func @transform_5(%arg0: i32) -> (i32, i32) {
    %c0_i32 = arith.constant 0 : i32
    %c0_i32_0 = arith.constant 0 : i32
    %c0_i32_1 = arith.constant 0 : i32
    return %c0_i32, %c0_i32_0 : i32, i32
  }
  func.func @transform_6(%arg0: i32) -> (i32, i32) {
    %c0_i32 = arith.constant 0 : i32
    %c0_i32_0 = arith.constant 0 : i32
    return %c0_i32, %arg0 : i32, i32
  }
}

</mosaic_0001>

<llo_original>
// kernel: aligner_forward.1
$region0: #{aligner_forward.1}
  #allocation0 [shape = 'u32[]', space=smem, size = 0x4, offset = 0x4, fixed_abs, tag = 'smem constant byte address 0x4 - core index']
  #allocation1 [shape = 'u32[144,128]{1,0:T(1,128)}', space=vmem, size = 0x12000, scoped, tag = 'internal scratch']
  #allocation2 [shape = 'bf16[98,512]{1,0:T(8,128)(2,1)}', space=vmem, size = 0x1a000, scoped, tag = 'scratch operand']
  #allocation3 [shape = 'bf16[16,896]{1,0:T(16,128)(2,1)}', space=vmem, size = 0x7000, scoped, tag = 'scratch operand']
  #allocation4 [shape = 'bf16[112,768]{1,0:T(16,128)(2,1)}', space=vmem, size = 0x2a000, scoped, tag = 'scratch operand']
  #allocation5 [shape = 'f32[14,768]{1,0:T(8,128)}', space=vmem, size = 0xc000, scoped, tag = 'scratch operand']
  %s0 = inlined_call_operand.vmem [shape: bf16[2,2,768], index: 0, kind: input, shape index: {}]
  %s1 = inlined_call_operand.vmem [shape: bf16[16,98], index: 1, kind: input, shape index: {}]
  %s2 = inlined_call_operand.vmem [shape: f32[16,1], index: 2, kind: input, shape index: {}]
  %s3 = inlined_call_operand.vmem [shape: bf16[14,112], index: 3, kind: input, shape index: {}]
  %s4 = inlined_call_operand.vmem [shape: f32[2,1], index: 4, kind: input, shape index: {}]
  %s5 = inlined_call_operand.vmem [shape: f32[1,512], index: 5, kind: input, shape index: {}]
  %s6 = inlined_call_operand.vmem [shape: f32[2,1024], index: 6, kind: output, shape index: {}]
  %s7 = sld [smem:[#allocation0]]
  $region57: #{aligner_forward.1} parent=0
    _
  %s9 = ssub.s32 1, %s7
  %s10 = scalar_select 0, %s9, %s7
  loop: start=0, step=1, limit=4
  $region2: #{aligner_forward.1} parent=0 // loop_pre_header
    _
  $region3: #{aligner_forward.1} parent=0 // loop_header
    %s12 = sphi 0, %s16
    %p13 = scmp.ge.s32.totalorder %s12, 4
    %s22 = sphi 0, %s24
    %s25 = sphi 0, %s22
    %s26 = sphi 0, %s25
    %s42 = sphi 0, %s26
    %s46 = sphi 0, %s46
    %s48 = sphi 0, %s46
    %s49 = sphi 0, %s48
    %s63 = sphi 0, %s49
    %s67 = sphi 0, %s67
    %s69 = sphi 0, %s67
    %s70 = sphi 0, %s69
    %s84 = sphi 0, %s70
    %s88 = sphi 0, %s88
    %s90 = sphi 0, %s88
    %s91 = sphi 0, %s90
    %s105 = sphi 0, %s91
    %s109 = sphi 0, %s109
    %s111 = sphi 0, %s109
    %s112 = sphi 0, %s111
    %s126 = sphi 0, %s112
    %s130 = sphi 0, %s130
    %s132 = sphi 0, %s130
    %s133 = sphi 0, %s132
    %s147 = sphi 0, %s133
    %s153 = sphi 0, %s155
    %s156 = sphi 0, %s153
    %s157 = sphi 0, %s156
    %s173 = sphi 0, %s157
  $region4: #{aligner_forward.1} parent=0 // loop_header_branch
    %15 = sbr.rel (%p13) target = $region8
  $region5: #{aligner_forward.1} parent=0 // loop_body
    %s17 = ssub.s32 %s12, 1
    %s18 = ssub.s32 %s12, 2
    %s19 = sadd.s32 %s12, 1
    %s20 = ssub.s32 %s12, %s19
    %p21 = scmp.eq.s32.totalorder %s20, 0
    %s23 = sadd.s32 %s22, 1
    %s24 = scalar_select %p21, %s22, %s23
    %p27 = pneg %p21
    %p28 = scmp.eq.s32.totalorder %s12, 1
    %p29 = por %p27, %p28
    %p30 = scmp.ne.s32.totalorder %s22, %s25
    %p31 = scmp.eq.s32.totalorder %s12, 0
    %p32 = por %p30, %p31
    %p33 = scmp.ne.s32.totalorder %s22, %s25
    %p34 = scmp.eq.s32.totalorder %s17, 1
    %p35 = por %p33, %p34
    %p36 = scmp.ne.s32.totalorder %s25, %s26
    %p37 = scmp.eq.s32.totalorder %s17, 0
    %p38 = por %p36, %p37
    %p39 = scmp.ne.s32.totalorder %s25, %s26
    %p40 = scmp.eq.s32.totalorder %s18, 1
    %p41 = por %p39, %p40
    %p43 = scmp.ne.s32.totalorder %s26, %s42
    %p44 = scmp.eq.s32.totalorder %s18, 0
    %p45 = por %p43, %p44
    %s47 = sadd.s32 %s46, 1
    %p50 = scmp.eq.s32.totalorder %s12, 1
    %p51 = scmp.ne.s32.totalorder %s46, %s48
    %p52 = scmp.eq.s32.totalorder %s12, 0
    %p53 = por %p51, %p52
    %p54 = scmp.ne.s32.totalorder %s46, %s48
    %p55 = scmp.eq.s32.totalorder %s17, 1
    %p56 = por %p54, %p55
    %p57 = scmp.ne.s32.totalorder %s48, %s49
    %p58 = scmp.eq.s32.totalorder %s17, 0
    %p59 = por %p57, %p58
    %p60 = scmp.ne.s32.totalorder %s48, %s49
    %p61 = scmp.eq.s32.totalorder %s18, 1
    %p62 = por %p60, %p61
    %p64 = scmp.ne.s32.totalorder %s49, %s63
    %p65 = scmp.eq.s32.totalorder %s18, 0
    %p66 = por %p64, %p65
    %s68 = sadd.s32 %s67, 1
    %p71 = scmp.eq.s32.totalorder %s12, 1
    %p72 = scmp.ne.s32.totalorder %s67, %s69
    %p73 = scmp.eq.s32.totalorder %s12, 0
    %p74 = por %p72, %p73
    %p75 = scmp.ne.s32.totalorder %s67, %s69
    %p76 = scmp.eq.s32.totalorder %s17, 1
    %p77 = por %p75, %p76
    %p78 = scmp.ne.s32.totalorder %s69, %s70
    %p79 = scmp.eq.s32.totalorder %s17, 0
    %p80 = por %p78, %p79
    %p81 = scmp.ne.s32.totalorder %s69, %s70
    %p82 = scmp.eq.s32.totalorder %s18, 1
    %p83 = por %p81, %p82
    %p85 = scmp.ne.s32.totalorder %s70, %s84
    %p86 = scmp.eq.s32.totalorder %s18, 0
    %p87 = por %p85, %p86
    %s89 = sadd.s32 %s88, 1
    %p92 = scmp.eq.s32.totalorder %s12, 1
    %p93 = scmp.ne.s32.totalorder %s88, %s90
    %p94 = scmp.eq.s32.totalorder %s12, 0
    %p95 = por %p93, %p94
    %p96 = scmp.ne.s32.totalorder %s88, %s90
    %p97 = scmp.eq.s32.totalorder %s17, 1
    %p98 = por %p96, %p97
    %p99 = scmp.ne.s32.totalorder %s90, %s91
    %p100 = scmp.eq.s32.totalorder %s17, 0
    %p101 = por %p99, %p100
    %p102 = scmp.ne.s32.totalorder %s90, %s91
    %p103 = scmp.eq.s32.totalorder %s18, 1
    %p104 = por %p102, %p103
    %p106 = scmp.ne.s32.totalorder %s91, %s105
    %p107 = scmp.eq.s32.totalorder %s18, 0
    %p108 = por %p106, %p107
    %s110 = sadd.s32 %s109, 1
    %p113 = scmp.eq.s32.totalorder %s12, 1
    %p114 = scmp.ne.s32.totalorder %s109, %s111
    %p115 = scmp.eq.s32.totalorder %s12, 0
    %p116 = por %p114, %p115
    %p117 = scmp.ne.s32.totalorder %s109, %s111
    %p118 = scmp.eq.s32.totalorder %s17, 1
    %p119 = por %p117, %p118
    %p120 = scmp.ne.s32.totalorder %s111, %s112
    %p121 = scmp.eq.s32.totalorder %s17, 0
    %p122 = por %p120, %p121
    %p123 = scmp.ne.s32.totalorder %s111, %s112
    %p124 = scmp.eq.s32.totalorder %s18, 1
    %p125 = por %p123, %p124
    %p127 = scmp.ne.s32.totalorder %s112, %s126
    %p128 = scmp.eq.s32.totalorder %s18, 0
    %p129 = por %p127, %p128
    %s131 = sadd.s32 %s130, 1
    %p134 = scmp.eq.s32.totalorder %s12, 1
    %p135 = scmp.ne.s32.totalorder %s130, %s132
    %p136 = scmp.eq.s32.totalorder %s12, 0
    %p137 = por %p135, %p136
    %p138 = scmp.ne.s32.totalorder %s130, %s132
    %p139 = scmp.eq.s32.totalorder %s17, 1
    %p140 = por %p138, %p139
    %p141 = scmp.ne.s32.totalorder %s132, %s133
    %p142 = scmp.eq.s32.totalorder %s17, 0
    %p143 = por %p141, %p142
    %p144 = scmp.ne.s32.totalorder %s132, %s133
    %p145 = scmp.eq.s32.totalorder %s18, 1
    %p146 = por %p144, %p145
    %p148 = scmp.ne.s32.totalorder %s133, %s147
    %p149 = scmp.eq.s32.totalorder %s18, 0
    %p150 = por %p148, %p149
    %s151 = ssub.s32 %s12, %s19
    %p152 = scmp.eq.s32.totalorder %s151, 0
    %s154 = sadd.s32 %s153, 1
    %s155 = scalar_select %p152, %s153, %s154
    %p158 = pneg %p152
    %p159 = scmp.eq.s32.totalorder %s12, 1
    %p160 = por %p158, %p159
    %p161 = scmp.ne.s32.totalorder %s153, %s156
    %p162 = scmp.eq.s32.totalorder %s12, 0
    %p163 = por %p161, %p162
    %p164 = scmp.ne.s32.totalorder %s153, %s156
    %p165 = scmp.eq.s32.totalorder %s17, 1
    %p166 = por %p164, %p165
    %p167 = scmp.ne.s32.totalorder %s156, %s157
    %p168 = scmp.eq.s32.totalorder %s17, 0
    %p169 = por %p167, %p168
    %p170 = scmp.ne.s32.totalorder %s156, %s157
    %p171 = scmp.eq.s32.totalorder %s18, 1
    %p172 = por %p170, %p171
    %p174 = scmp.ne.s32.totalorder %s157, %s173
    %p175 = scmp.eq.s32.totalorder %s18, 0
    %p176 = por %p174, %p175
    %p177 = scmp.le.s32.totalorder 1, %s12
    %p178 = scmp.lt.s32.totalorder %s12, 3
    %p179 = pnand %p177, %p178
    %p180 = pneg %p179
    // Predicated region
    $region9: #{aligner_forward.1} parent=5 // pred_check
      _
    $region10: #{aligner_forward.1} parent=5 // pred_check_branch
      %182 = sbr.rel (%p179) target = $region12
    $region11: #{aligner_forward.1} parent=5 // pred_region
      %s183 = ssub.s32 %s12, 1
      // Predicated region
      $region13: #{aligner_forward.1} parent=11 // pred_check
        %p184 = pneg %p59
      $region14: #{aligner_forward.1} parent=11 // pred_check_branch
        %186 = sbr.rel (%p184) target = $region16
      $region15: #{aligner_forward.1} parent=11 // pred_region
        _
      $region16: #{aligner_forward.1} parent=11 // pred_fallthru
        _
      // Predicated region
      $region17: #{aligner_forward.1} parent=11 // pred_check
        %p187 = pneg %p80
      $region18: #{aligner_forward.1} parent=11 // pred_check_branch
        %189 = sbr.rel (%p187) target = $region20
      $region19: #{aligner_forward.1} parent=11 // pred_region
        _
      $region20: #{aligner_forward.1} parent=11 // pred_fallthru
        _
      // Predicated region
      $region21: #{aligner_forward.1} parent=11 // pred_check
        %p190 = pneg %p101
      $region22: #{aligner_forward.1} parent=11 // pred_check_branch
        %192 = sbr.rel (%p190) target = $region24
      $region23: #{aligner_forward.1} parent=11 // pred_region
        _
      $region24: #{aligner_forward.1} parent=11 // pred_fallthru
        _
      // Predicated region
      $region25: #{aligner_forward.1} parent=11 // pred_check
        %p193 = pneg %p122
      $region26: #{aligner_forward.1} parent=11 // pred_check_branch
        %195 = sbr.rel (%p193) target = $region28
      $region27: #{aligner_forward.1} parent=11 // pred_region
        _
      $region28: #{aligner_forward.1} parent=11 // pred_fallthru
        _
      // Predicated region
      $region29: #{aligner_forward.1} parent=11 // pred_check
        %p196 = pneg %p143
      $region30: #{aligner_forward.1} parent=11 // pred_check_branch
        %198 = sbr.rel (%p196) target = $region32
      $region31: #{aligner_forward.1} parent=11 // pred_region
        _
      $region32: #{aligner_forward.1} parent=11 // pred_fallthru
        _
    $region12: #{aligner_forward.1} parent=5 // pred_fallthru
      _
    %p199 = scmp.lt.s32.totalorder %s12, 2
    // Predicated region
    $region33: #{aligner_forward.1} parent=5 // pred_check
      %p200 = pneg %p199
    $region34: #{aligner_forward.1} parent=5 // pred_check_branch
      %202 = sbr.rel (%p200) target = $region36
    $region35: #{aligner_forward.1} parent=5 // pred_region
      // Predicated region
      $region37: #{aligner_forward.1} parent=35 // pred_check
        %p203 = pneg %p32
      $region38: #{aligner_forward.1} parent=35 // pred_check_branch
        %205 = sbr.rel (%p203) target = $region40
      $region39: #{aligner_forward.1} parent=35 // pred_region
        %p206 = scmp.lt.s32.totalorder %s12, 1
        %s207 = scalar_select %p206, %s12, 1
        %s208 = smul.addr %s207, 6
        %s209 = scalar_lea.vmem %s0, %s208
      $region40: #{aligner_forward.1} parent=35 // pred_fallthru
        _
    $region36: #{aligner_forward.1} parent=5 // pred_fallthru
      _
    %p210 = scmp.le.s32.totalorder 1, %s12
    %p211 = scmp.lt.s32.totalorder %s12, 3
    %p212 = pnand %p210, %p211
    %p213 = pneg %p212
    // Predicated region
    $region41: #{aligner_forward.1} parent=5 // pred_check
      _
    $region42: #{aligner_forward.1} parent=5 // pred_check_branch
      %215 = sbr.rel (%p212) target = $region44
    $region43: #{aligner_forward.1} parent=5 // pred_region
      %s216 = ssub.s32 %s12, 1
      %p217 = scmp.lt.s32.totalorder %s17, 1
      %s218 = scalar_select %p217, %s17, 1
      %s219 = smul.addr %s218, 6
      %s220 = scalar_lea.vmem %s0, %s219
      %p221 = pneg %p38
      %p222 = pneg %p35
      %p223 = pneg %p59
      %p224 = pneg %p56
      %p225 = pneg %p80
      %p226 = pneg %p77
      %p227 = pneg %p101
      %p228 = pneg %p98
      %p229 = pneg %p122
      %p230 = pneg %p119
      %p231 = pneg %p143
      %p232 = pneg %p140
      %p233 = pneg %p169
      %p234 = pneg %p166
      %s235 = smul.u32 4, %s17
      %p236 = scmp.lt.s32.totalorder %s235, 7
      %s237 = scalar_select %p236, %s235, 7
      %s238 = smul.addr %s237, 2
      %s239 = scalar_lea.vmem %s6, %s238
      %p240 = scmp.lt.s32.totalorder %s17, 1
      %s241 = scalar_select %p240, %s17, 1
      %s242 = smul.addr %s241, 6
      %s243 = scalar_lea.vmem %s0, %s242
      %s244 = smul.u32 4, %s17
      %p245 = scmp.lt.s32.totalorder %s244, 7
      %s246 = scalar_select %p245, %s244, 7
      %s247 = smul.addr %s246, 2
      %s248 = scalar_lea.vmem %s6, %s247
      %s249 = smul.u32 4, %s17
      %v251 = vld [vmem:[%s243] sm:$0x3f]
      %v254 = vunpack.c.l.s4 1935823168
      %v255 = vunpack.c.0.s8 %v254
      %v256 = vlaneseq
      %v257 = vshrl.u32 %v256, 7
      %v258 = vsub.s32 %v255, %v257
      %v259 = vrot.slane %v251, %v258
      %v260 = vcombine.high %v259, %v259
      %v262 = vunpack.c.l.s4 1935823168
      %v263 = vunpack.c.0.s8 %v262
      %v264 = vlaneseq
      %v265 = vshrl.u32 %v264, 7
      %v266 = vsub.s32 %v263, %v265
      %v267 = vrot.slane %v259, %v266
      %v269 = vunpack.c.l.s4 1935823168
      %v270 = vunpack.c.0.s8 %v269
      %v271 = vlaneseq
      %v272 = vshrl.u32 %v271, 7
      %v273 = vsub.s32 %v270, %v272
      %v274 = vrot.slane %v260, %v273
      %277 = vst [vmem:[#allocation2] sm:$0x11] %v267
      %278 = vst [vmem:[#allocation2 + $0x8] sm:$0x11] %v274
      %v279 = vcombine.high %v251, %v251
      %v281 = vunpack.c.l.s4 1935823168
      %v282 = vunpack.c.0.s8 %v281
      %v283 = vlaneseq
      %v284 = vshrl.u32 %v283, 7
      %v285 = vsub.s32 %v282, %v284
      %v286 = vrot.slane %v279, %v285
      %v287 = vcombine.low %v259, %v259
      %v288 = vcombine.low %v286, %v286
      %v290 = vunpack.c.l.s4 1935823168
      %v291 = vunpack.c.0.s8 %v290
      %v292 = vlaneseq
      %v293 = vshrl.u32 %v292, 7
      %v294 = vsub.s32 %v291, %v293
      %v295 = vrot.slane %v287, %v294
      %v297 = vunpack.c.l.s4 1935823168
      %v298 = vunpack.c.0.s8 %v297
      %v299 = vlaneseq
      %v300 = vshrl.u32 %v299, 7
      %v301 = vsub.s32 %v298, %v300
      %v302 = vrot.slane %v288, %v301
      %303 = vrot.lane.b32.xlu0 %v295, 127
      %v304 = vpop.permute.xlu0 %303
      %305 = vrot.lane.b32.xlu0 %v267, 127
      %v306 = vpop.permute.xlu0 %305
      %307 = vrot.lane.b32.xlu0 %v302, 127
      %v308 = vpop.permute.xlu0 %307
      %v309 = vrot.slane %v304, 4
      %v310 = vrot.slane %v306, 4
      %v311 = vrot.slane %v308, 4
      %vm312 = vcmask 1043456
      %v313 = vsel %vm312, %v309, %v310
      %vm314 = vcmask 1039360
      %v315 = vsel %vm314, %v304, %v313
      %v316 = vsel %vm312, %v310, %v311
      %v317 = vsel %vm314, %v306, %v316
      %320 = vst [vmem:[#allocation2] sm:$0x22] %v315
      %321 = vst [vmem:[#allocation2 + $0x8] sm:$0x22] %v317
      %v322 = vcombine.low %v251, %v251
      %v324 = vunpack.c.l.s4 1935823168
      %v325 = vunpack.c.0.s8 %v324
      %v326 = vlaneseq
      %v327 = vshrl.u32 %v326, 7
      %v328 = vsub.s32 %v325, %v327
      %v329 = vrot.slane %v322, %v328
      %v330 = vcombine.high %v329, %v329
      %v332 = vunpack.c.l.s4 1935823168
      %v333 = vunpack.c.0.s8 %v332
      %v334 = vlaneseq
      %v335 = vshrl.u32 %v334, 7
      %v336 = vsub.s32 %v333, %v335
      %v337 = vrot.slane %v329, %v336
      %v339 = vunpack.c.l.s4 1935823168
      %v340 = vunpack.c.0.s8 %v339
      %v341 = vlaneseq
      %v342 = vshrl.u32 %v341, 7
      %v343 = vsub.s32 %v340, %v342
      %v344 = vrot.slane %v330, %v343
      %345 = vrot.lane.b32.xlu0 %v337, 126
      %v346 = vpop.permute.xlu0 %345
      %347 = vrot.lane.b32.xlu0 %v344, 126
      %v348 = vpop.permute.xlu0 %347
      %349 = vrot.lane.b32.xlu0 %v267, 126
      %v350 = vpop.permute.xlu0 %349
      %v351 = vrot.slane %v346, 4
      %v352 = vrot.slane %v348, 4
      %v353 = vrot.slane %v350, 4
      %v354 = vsel %vm312, %v351, %v352
      %vm355 = vcmask 1031168
      %v356 = vsel %vm355, %v346, %v354
      %v357 = vsel %vm312, %v352, %v353
      %v358 = vsel %vm355, %v348, %v357
      %361 = vst [vmem:[#allocation2] sm:$0x44] %v356
      %362 = vst [vmem:[#allocation2 + $0x8] sm:$0x44] %v358
      %v363 = vcombine.low %v329, %v329
      %v365 = vunpack.c.l.s4 1935823168
      %v366 = vunpack.c.0.s8 %v365
      %v367 = vlaneseq
      %v368 = vshrl.u32 %v367, 7
      %v369 = vsub.s32 %v366, %v368
      %v370 = vrot.slane %v363, %v369
      %371 = vrot.lane.b32.xlu0 %v370, 125
      %v372 = vpop.permute.xlu0 %371
      %373 = vrot.lane.b32.xlu0 %v337, 125
      %v374 = vpop.permute.xlu0 %373
      %375 = vrot.lane.b32.xlu0 %v295, 125
      %v376 = vpop.permute.xlu0 %375
      %v377 = vrot.slane %v372, 4
      %v378 = vrot.slane %v374, 4
      %v379 = vrot.slane %v376, 4
      %v380 = vsel %vm312, %v377, %v378
      %vm381 = vcmask 1022976
      %v382 = vsel %vm381, %v372, %v380
      %v383 = vsel %vm312, %v378, %v379
      %v384 = vsel %vm381, %v374, %v383
      %387 = vst [vmem:[#allocation2] sm:$0x88] %v382
      %388 = vst [vmem:[#allocation2 + $0x8] sm:$0x88] %v384
      %v390 = vunpack.c.l.s4 1935823168
      %v391 = vunpack.c.0.s8 %v390
      %v392 = vlaneseq
      %v393 = vshrl.u32 %v392, 7
      %v394 = vsub.s32 %v391, %v393
      %v395 = vrot.slane %v286, %v394
      %396 = vrot.lane.b32.xlu0 %v267, 124
      %v397 = vpop.permute.xlu0 %396
      %398 = vrot.lane.b32.xlu0 %v274, 124
      %v399 = vpop.permute.xlu0 %398
      %400 = vrot.lane.b32.xlu0 %v395, 124
      %v401 = vpop.permute.xlu0 %400
      %v402 = vrot.slane %v397, 4
      %v403 = vrot.slane %v399, 4
      %v404 = vrot.slane %v401, 4
      %v405 = vsel %vm312, %v402, %v403
      %vm406 = vcmask 1014784
      %v407 = vsel %vm406, %v397, %v405
      %v408 = vsel %vm312, %v403, %v404
      %v409 = vsel %vm406, %v399, %v408
      %412 = vst [vmem:[#allocation2 + $0x10] sm:$0x11] %v407
      %413 = vst [vmem:[#allocation2 + $0x18] sm:$0x11] %v409
      %414 = vrot.lane.b32.xlu0 %v295, 123
      %v415 = vpop.permute.xlu0 %414
      %416 = vrot.lane.b32.xlu0 %v267, 123
      %v417 = vpop.permute.xlu0 %416
      %418 = vrot.lane.b32.xlu0 %v302, 123
      %v419 = vpop.permute.xlu0 %418
      %v420 = vrot.slane %v415, 4
      %v421 = vrot.slane %v417, 4
      %v422 = vrot.slane %v419, 4
      %v423 = vsel %vm312, %v420, %v421
      %vm424 = vcmask 1006592
      %v425 = vsel %vm424, %v415, %v423
      %v426 = vsel %vm312, %v421, %v422
      %v427 = vsel %vm424, %v417, %v426
      %430 = vst [vmem:[#allocation2 + $0x10] sm:$0x22] %v425
      %431 = vst [vmem:[#allocation2 + $0x18] sm:$0x22] %v427
      %432 = vrot.lane.b32.xlu0 %v337, 122
      %v433 = vpop.permute.xlu0 %432
      %434 = vrot.lane.b32.xlu0 %v344, 122
      %v435 = vpop.permute.xlu0 %434
      %436 = vrot.lane.b32.xlu0 %v267, 122
      %v437 = vpop.permute.xlu0 %436
      %v438 = vrot.slane %v433, 4
      %v439 = vrot.slane %v435, 4
      %v440 = vrot.slane %v437, 4
      %v441 = vsel %vm312, %v438, %v439
      %vm442 = vcmask 998400
      %v443 = vsel %vm442, %v433, %v441
      %v444 = vsel %vm312, %v439, %v440
      %v445 = vsel %vm442, %v435, %v444
      %448 = vst [vmem:[#allocation2 + $0x10] sm:$0x44] %v443
      %449 = vst [vmem:[#allocation2 + $0x18] sm:$0x44] %v445
      %450 = vrot.lane.b32.xlu0 %v370, 106
      %v451 = vpop.permute.xlu0 %450
      %452 = vrot.lane.b32.xlu0 %v337, 106
      %v453 = vpop.permute.xlu0 %452
      %454 = vrot.lane.b32.xlu0 %v295, 106
      %v455 = vpop.permute.xlu0 %454
      %v456 = vrot.slane %v451, 4
      %v457 = vrot.slane %v453, 4
      %v458 = vrot.slane %v455, 4
      %v459 = vsel %vm312, %v456, %v457
      %vm460 = vcmask 867328
      %v461 = vsel %vm460, %v451, %v459
      %v462 = vsel %vm312, %v457, %v458
      %v463 = vsel %vm460, %v453, %v462
      %466 = vst [vmem:[#allocation2 + $0x10] sm:$0x88] %v461
      %467 = vst [vmem:[#allocation2 + $0x18] sm:$0x88] %v463
      %468 = vrot.lane.b32.xlu0 %v267, 105
      %v469 = vpop.permute.xlu0 %468
      %470 = vrot.lane.b32.xlu0 %v274, 105
      %v471 = vpop.permute.xlu0 %470
      %472 = vrot.lane.b32.xlu0 %v395, 105
      %v473 = vpop.permute.xlu0 %472
      %v474 = vrot.slane %v469, 4
      %v475 = vrot.slane %v471, 4
      %v476 = vrot.slane %v473, 4
      %v477 = vsel %vm312, %v474, %v475
      %vm478 = vcmask 859136
      %v479 = vsel %vm478, %v469, %v477
      %v480 = vsel %vm312, %v475, %v476
      %v481 = vsel %vm478, %v471, %v480
      %484 = vst [vmem:[#allocation2 + $0x20] sm:$0x11] %v479
      %485 = vst [vmem:[#allocation2 + $0x28] sm:$0x11] %v481
      %486 = vrot.lane.b32.xlu0 %v295, 104
      %v487 = vpop.permute.xlu0 %486
      %488 = vrot.lane.b32.xlu0 %v267, 104
      %v489 = vpop.permute.xlu0 %488
      %490 = vrot.lane.b32.xlu0 %v302, 104
      %v491 = vpop.permute.xlu0 %490
      %v492 = vrot.slane %v487, 4
      %v493 = vrot.slane %v489, 4
      %v494 = vrot.slane %v491, 4
      %v495 = vsel %vm312, %v492, %v493
      %vm496 = vcmask 850944
      %v497 = vsel %vm496, %v487, %v495
      %v498 = vsel %vm312, %v493, %v494
      %v499 = vsel %vm496, %v489, %v498
      %502 = vst [vmem:[#allocation2 + $0x20] sm:$0x22] %v497
      %503 = vst [vmem:[#allocation2 + $0x28] sm:$0x22] %v499
      %504 = vrot.lane.b32.xlu0 %v337, 103
      %v505 = vpop.permute.xlu0 %504
      %506 = vrot.lane.b32.xlu0 %v344, 103
      %v507 = vpop.permute.xlu0 %506
      %508 = vrot.lane.b32.xlu0 %v267, 103
      %v509 = vpop.permute.xlu0 %508
      %v510 = vrot.slane %v505, 4
      %v511 = vrot.slane %v507, 4
      %v512 = vrot.slane %v509, 4
      %v513 = vsel %vm312, %v510, %v511
      %vm514 = vcmask 842752
      %v515 = vsel %vm514, %v505, %v513
      %v516 = vsel %vm312, %v511, %v512
      %v517 = vsel %vm514, %v507, %v516
      %520 = vst [vmem:[#allocation2 + $0x20] sm:$0x44] %v515
      %521 = vst [vmem:[#allocation2 + $0x28] sm:$0x44] %v517
      %522 = vrot.lane.b32.xlu0 %v370, 102
      %v523 = vpop.permute.xlu0 %522
      %524 = vrot.lane.b32.xlu0 %v337, 102
      %v525 = vpop.permute.xlu0 %524
      %526 = vrot.lane.b32.xlu0 %v295, 102
      %v527 = vpop.permute.xlu0 %526
      %v528 = vrot.slane %v523, 4
      %v529 = vrot.slane %v525, 4
      %v530 = vrot.slane %v527, 4
      %v531 = vsel %vm312, %v528, %v529
      %vm532 = vcmask 834560
      %v533 = vsel %vm532, %v523, %v531
      %v534 = vsel %vm312, %v529, %v530
      %v535 = vsel %vm532, %v525, %v534
      %538 = vst [vmem:[#allocation2 + $0x20] sm:$0x88] %v533
      %539 = vst [vmem:[#allocation2 + $0x28] sm:$0x88] %v535
      %540 = vrot.lane.b32.xlu0 %v267, 101
      %v541 = vpop.permute.xlu0 %540
      %542 = vrot.lane.b32.xlu0 %v274, 101
      %v543 = vpop.permute.xlu0 %542
      %544 = vrot.lane.b32.xlu0 %v395, 101
      %v545 = vpop.permute.xlu0 %544
      %v546 = vrot.slane %v541, 4
      %v547 = vrot.slane %v543, 4
      %v548 = vrot.slane %v545, 4
      %v549 = vsel %vm312, %v546, %v547
      %vm550 = vcmask 826368
      %v551 = vsel %vm550, %v541, %v549
      %v552 = vsel %vm312, %v547, %v548
      %v553 = vsel %vm550, %v543, %v552
      %556 = vst [vmem:[#allocation2 + $0x30] sm:$0x11] %v551
      %557 = vst [vmem:[#allocation2 + $0x38] sm:$0x11] %v553
      %558 = vrot.lane.b32.xlu0 %v295, 100
      %v559 = vpop.permute.xlu0 %558
      %560 = vrot.lane.b32.xlu0 %v267, 100
      %v561 = vpop.permute.xlu0 %560
      %562 = vrot.lane.b32.xlu0 %v302, 100
      %v563 = vpop.permute.xlu0 %562
      %v564 = vrot.slane %v559, 4
      %v565 = vrot.slane %v561, 4
      %v566 = vrot.slane %v563, 4
      %v567 = vsel %vm312, %v564, %v565
      %vm568 = vcmask 818176
      %v569 = vsel %vm568, %v559, %v567
      %v570 = vsel %vm312, %v565, %v566
      %v571 = vsel %vm568, %v561, %v570
      %574 = vst [vmem:[#allocation2 + $0x30] sm:$0x22] %v569
      %575 = vst [vmem:[#allocation2 + $0x38] sm:$0x22] %v571
      %576 = vrot.lane.b32.xlu0 %v337, 84
      %v577 = vpop.permute.xlu0 %576
      %578 = vrot.lane.b32.xlu0 %v344, 84
      %v579 = vpop.permute.xlu0 %578
      %580 = vrot.lane.b32.xlu0 %v267, 84
      %v581 = vpop.permute.xlu0 %580
      %v582 = vrot.slane %v577, 4
      %v583 = vrot.slane %v579, 4
      %v584 = vrot.slane %v581, 4
      %v585 = vsel %vm312, %v582, %v583
      %vm586 = vcmask 687104
      %v587 = vsel %vm586, %v577, %v585
      %v588 = vsel %vm312, %v583, %v584
      %v589 = vsel %vm586, %v579, %v588
      %592 = vst [vmem:[#allocation2 + $0x30] sm:$0x44] %v587
      %593 = vst [vmem:[#allocation2 + $0x38] sm:$0x44] %v589
      %594 = vrot.lane.b32.xlu0 %v370, 83
      %v595 = vpop.permute.xlu0 %594
      %596 = vrot.lane.b32.xlu0 %v337, 83
      %v597 = vpop.permute.xlu0 %596
      %598 = vrot.lane.b32.xlu0 %v295, 83
      %v599 = vpop.permute.xlu0 %598
      %v600 = vrot.slane %v595, 4
      %v601 = vrot.slane %v597, 4
      %v602 = vrot.slane %v599, 4
      %v603 = vsel %vm312, %v600, %v601
      %vm604 = vcmask 678912
      %v605 = vsel %vm604, %v595, %v603
      %v606 = vsel %vm312, %v601, %v602
      %v607 = vsel %vm604, %v597, %v606
      %610 = vst [vmem:[#allocation2 + $0x30] sm:$0x88] %v605
      %611 = vst [vmem:[#allocation2 + $0x38] sm:$0x88] %v607
      %612 = vrot.lane.b32.xlu0 %v267, 82
      %v613 = vpop.permute.xlu0 %612
      %614 = vrot.lane.b32.xlu0 %v274, 82
      %v615 = vpop.permute.xlu0 %614
      %616 = vrot.lane.b32.xlu0 %v395, 82
      %v617 = vpop.permute.xlu0 %616
      %v618 = vrot.slane %v613, 4
      %v619 = vrot.slane %v615, 4
      %v620 = vrot.slane %v617, 4
      %v621 = vsel %vm312, %v618, %v619
      %vm622 = vcmask 670720
      %v623 = vsel %vm622, %v613, %v621
      %v624 = vsel %vm312, %v619, %v620
      %v625 = vsel %vm622, %v615, %v624
      %628 = vst [vmem:[#allocation2 + $0x40] sm:$0x11] %v623
      %629 = vst [vmem:[#allocation2 + $0x48] sm:$0x11] %v625
      %630 = vrot.lane.b32.xlu0 %v295, 81
      %v631 = vpop.permute.xlu0 %630
      %632 = vrot.lane.b32.xlu0 %v267, 81
      %v633 = vpop.permute.xlu0 %632
      %634 = vrot.lane.b32.xlu0 %v302, 81
      %v635 = vpop.permute.xlu0 %634
      %v636 = vrot.slane %v631, 4
      %v637 = vrot.slane %v633, 4
      %v638 = vrot.slane %v635, 4
      %v639 = vsel %vm312, %v636, %v637
      %vm640 = vcmask 662528
      %v641 = vsel %vm640, %v631, %v639
      %v642 = vsel %vm312, %v637, %v638
      %v643 = vsel %vm640, %v633, %v642
      %646 = vst [vmem:[#allocation2 + $0x40] sm:$0x22] %v641
      %647 = vst [vmem:[#allocation2 + $0x48] sm:$0x22] %v643
      %648 = vrot.lane.b32.xlu0 %v337, 80
      %v649 = vpop.permute.xlu0 %648
      %650 = vrot.lane.b32.xlu0 %v344, 80
      %v651 = vpop.permute.xlu0 %650
      %652 = vrot.lane.b32.xlu0 %v267, 80
      %v653 = vpop.permute.xlu0 %652
      %v654 = vrot.slane %v649, 4
      %v655 = vrot.slane %v651, 4
      %v656 = vrot.slane %v653, 4
      %v657 = vsel %vm312, %v654, %v655
      %vm658 = vcmask 654336
      %v659 = vsel %vm658, %v649, %v657
      %v660 = vsel %vm312, %v655, %v656
      %v661 = vsel %vm658, %v651, %v660
      %664 = vst [vmem:[#allocation2 + $0x40] sm:$0x44] %v659
      %665 = vst [vmem:[#allocation2 + $0x48] sm:$0x44] %v661
      %666 = vrot.lane.b32.xlu0 %v370, 79
      %v667 = vpop.permute.xlu0 %666
      %668 = vrot.lane.b32.xlu0 %v337, 79
      %v669 = vpop.permute.xlu0 %668
      %670 = vrot.lane.b32.xlu0 %v295, 79
      %v671 = vpop.permute.xlu0 %670
      %v672 = vrot.slane %v667, 4
      %v673 = vrot.slane %v669, 4
      %v674 = vrot.slane %v671, 4
      %v675 = vsel %vm312, %v672, %v673
      %vm676 = vcmask 646144
      %v677 = vsel %vm676, %v667, %v675
      %v678 = vsel %vm312, %v673, %v674
      %v679 = vsel %vm676, %v669, %v678
      %682 = vst [vmem:[#allocation2 + $0x40] sm:$0x88] %v677
      %683 = vst [vmem:[#allocation2 + $0x48] sm:$0x88] %v679
      %684 = vrot.lane.b32.xlu0 %v267, 78
      %v685 = vpop.permute.xlu0 %684
      %686 = vrot.lane.b32.xlu0 %v274, 78
      %v687 = vpop.permute.xlu0 %686
      %688 = vrot.lane.b32.xlu0 %v395, 78
      %v689 = vpop.permute.xlu0 %688
      %v690 = vrot.slane %v685, 4
      %v691 = vrot.slane %v687, 4
      %v692 = vrot.slane %v689, 4
      %v693 = vsel %vm312, %v690, %v691
      %vm694 = vcmask 637952
      %v695 = vsel %vm694, %v685, %v693
      %v696 = vsel %vm312, %v691, %v692
      %v697 = vsel %vm694, %v687, %v696
      %700 = vst [vmem:[#allocation2 + $0x50] sm:$0x11] %v695
      %701 = vst [vmem:[#allocation2 + $0x58] sm:$0x11] %v697
      %702 = vrot.lane.b32.xlu0 %v295, 62
      %v703 = vpop.permute.xlu0 %702
      %704 = vrot.lane.b32.xlu0 %v267, 62
      %v705 = vpop.permute.xlu0 %704
      %706 = vrot.lane.b32.xlu0 %v302, 62
      %v707 = vpop.permute.xlu0 %706
      %v708 = vrot.slane %v703, 4
      %v709 = vrot.slane %v705, 4
      %v710 = vrot.slane %v707, 4
      %v711 = vsel %vm312, %v708, %v709
      %vm712 = vcmask 506880
      %v713 = vsel %vm712, %v703, %v711
      %v714 = vsel %vm312, %v709, %v710
      %v715 = vsel %vm712, %v705, %v714
      %718 = vst [vmem:[#allocation2 + $0x50] sm:$0x22] %v713
      %719 = vst [vmem:[#allocation2 + $0x58] sm:$0x22] %v715
      %720 = vrot.lane.b32.xlu0 %v337, 61
      %v721 = vpop.permute.xlu0 %720
      %722 = vrot.lane.b32.xlu0 %v344, 61
      %v723 = vpop.permute.xlu0 %722
      %724 = vrot.lane.b32.xlu0 %v267, 61
      %v725 = vpop.permute.xlu0 %724
      %v726 = vrot.slane %v721, 4
      %v727 = vrot.slane %v723, 4
      %v728 = vrot.slane %v725, 4
      %v729 = vsel %vm312, %v726, %v727
      %vm730 = vcmask 498688
      %v731 = vsel %vm730, %v721, %v729
      %v732 = vsel %vm312, %v727, %v728
      %v733 = vsel %vm730, %v723, %v732
      %736 = vst [vmem:[#allocation2 + $0x50] sm:$0x44] %v731
      %737 = vst [vmem:[#allocation2 + $0x58] sm:$0x44] %v733
      %738 = vrot.lane.b32.xlu0 %v370, 60
      %v739 = vpop.permute.xlu0 %738
      %740 = vrot.lane.b32.xlu0 %v337, 60
      %v741 = vpop.permute.xlu0 %740
      %742 = vrot.lane.b32.xlu0 %v295, 60
      %v743 = vpop.permute.xlu0 %742
      %v744 = vrot.slane %v739, 4
      %v745 = vrot.slane %v741, 4
      %v746 = vrot.slane %v743, 4
      %v747 = vsel %vm312, %v744, %v745
      %vm748 = vcmask 490496
      %v749 = vsel %vm748, %v739, %v747
      %v750 = vsel %vm312, %v745, %v746
      %v751 = vsel %vm748, %v741, %v750
      %754 = vst [vmem:[#allocation2 + $0x50] sm:$0x88] %v749
      %755 = vst [vmem:[#allocation2 + $0x58] sm:$0x88] %v751
      %756 = vrot.lane.b32.xlu0 %v267, 59
      %v757 = vpop.permute.xlu0 %756
      %758 = vrot.lane.b32.xlu0 %v274, 59
      %v759 = vpop.permute.xlu0 %758
      %760 = vrot.lane.b32.xlu0 %v395, 59
      %v761 = vpop.permute.xlu0 %760
      %v762 = vrot.slane %v757, 4
      %v763 = vrot.slane %v759, 4
      %v764 = vrot.slane %v761, 4
      %v765 = vsel %vm312, %v762, %v763
      %vm766 = vcmask 482304
      %v767 = vsel %vm766, %v757, %v765
      %v768 = vsel %vm312, %v763, %v764
      %v769 = vsel %vm766, %v759, %v768
      %772 = vst [vmem:[#allocation2 + $0x60] sm:$0x11] %v767
      %773 = vst [vmem:[#allocation2 + $0x68] sm:$0x11] %v769
      %774 = vrot.lane.b32.xlu0 %v295, 58
      %v775 = vpop.permute.xlu0 %774
      %776 = vrot.lane.b32.xlu0 %v267, 58
      %v777 = vpop.permute.xlu0 %776
      %778 = vrot.lane.b32.xlu0 %v302, 58
      %v779 = vpop.permute.xlu0 %778
      %v780 = vrot.slane %v775, 4
      %v781 = vrot.slane %v777, 4
      %v782 = vrot.slane %v779, 4
      %v783 = vsel %vm312, %v780, %v781
      %vm784 = vcmask 474112
      %v785 = vsel %vm784, %v775, %v783
      %v786 = vsel %vm312, %v781, %v782
      %v787 = vsel %vm784, %v777, %v786
      %790 = vst [vmem:[#allocation2 + $0x60] sm:$0x22] %v785
      %791 = vst [vmem:[#allocation2 + $0x68] sm:$0x22] %v787
      %792 = vrot.lane.b32.xlu0 %v337, 57
      %v793 = vpop.permute.xlu0 %792
      %794 = vrot.lane.b32.xlu0 %v344, 57
      %v795 = vpop.permute.xlu0 %794
      %796 = vrot.lane.b32.xlu0 %v267, 57
      %v797 = vpop.permute.xlu0 %796
      %v798 = vrot.slane %v793, 4
      %v799 = vrot.slane %v795, 4
      %v800 = vrot.slane %v797, 4
      %v801 = vsel %vm312, %v798, %v799
      %vm802 = vcmask 465920
      %v803 = vsel %vm802, %v793, %v801
      %v804 = vsel %vm312, %v799, %v800
      %v805 = vsel %vm802, %v795, %v804
      %808 = vst [vmem:[#allocation2 + $0x60] sm:$0x44] %v803
      %809 = vst [vmem:[#allocation2 + $0x68] sm:$0x44] %v805
      %810 = vrot.lane.b32.xlu0 %v370, 56
      %v811 = vpop.permute.xlu0 %810
      %812 = vrot.lane.b32.xlu0 %v337, 56
      %v813 = vpop.permute.xlu0 %812
      %814 = vrot.lane.b32.xlu0 %v295, 56
      %v815 = vpop.permute.xlu0 %814
      %v816 = vrot.slane %v811, 4
      %v817 = vrot.slane %v813, 4
      %v818 = vrot.slane %v815, 4
      %v819 = vsel %vm312, %v816, %v817
      %vm820 = vcmask 457728
      %v821 = vsel %vm820, %v811, %v819
      %v822 = vsel %vm312, %v817, %v818
      %v823 = vsel %vm820, %v813, %v822
      %826 = vst [vmem:[#allocation2 + $0x60] sm:$0x88] %v821
      %827 = vst [vmem:[#allocation2 + $0x68] sm:$0x88] %v823
      %828 = vrot.lane.b32.xlu0 %v267, 40
      %v829 = vpop.permute.xlu0 %828
      %830 = vrot.lane.b32.xlu0 %v274, 40
      %v831 = vpop.permute.xlu0 %830
      %832 = vrot.lane.b32.xlu0 %v395, 40
      %v833 = vpop.permute.xlu0 %832
      %v834 = vrot.slane %v829, 4
      %v835 = vrot.slane %v831, 4
      %v836 = vrot.slane %v833, 4
      %v837 = vsel %vm312, %v834, %v835
      %vm838 = vcmask 326656
      %v839 = vsel %vm838, %v829, %v837
      %v840 = vsel %vm312, %v835, %v836
      %v841 = vsel %vm838, %v831, %v840
      %844 = vst [vmem:[#allocation2 + $0x70] sm:$0x11] %v839
      %845 = vst [vmem:[#allocation2 + $0x78] sm:$0x11] %v841
      %846 = vrot.lane.b32.xlu0 %v295, 39
      %v847 = vpop.permute.xlu0 %846
      %848 = vrot.lane.b32.xlu0 %v267, 39
      %v849 = vpop.permute.xlu0 %848
      %850 = vrot.lane.b32.xlu0 %v302, 39
      %v851 = vpop.permute.xlu0 %850
      %v852 = vrot.slane %v847, 4
      %v853 = vrot.slane %v849, 4
      %v854 = vrot.slane %v851, 4
      %v855 = vsel %vm312, %v852, %v853
      %vm856 = vcmask 318464
      %v857 = vsel %vm856, %v847, %v855
      %v858 = vsel %vm312, %v853, %v854
      %v859 = vsel %vm856, %v849, %v858
      %862 = vst [vmem:[#allocation2 + $0x70] sm:$0x22] %v857
      %863 = vst [vmem:[#allocation2 + $0x78] sm:$0x22] %v859
      %864 = vrot.lane.b32.xlu0 %v337, 38
      %v865 = vpop.permute.xlu0 %864
      %866 = vrot.lane.b32.xlu0 %v344, 38
      %v867 = vpop.permute.xlu0 %866
      %868 = vrot.lane.b32.xlu0 %v267, 38
      %v869 = vpop.permute.xlu0 %868
      %v870 = vrot.slane %v865, 4
      %v871 = vrot.slane %v867, 4
      %v872 = vrot.slane %v869, 4
      %v873 = vsel %vm312, %v870, %v871
      %vm874 = vcmask 310272
      %v875 = vsel %vm874, %v865, %v873
      %v876 = vsel %vm312, %v871, %v872
      %v877 = vsel %vm874, %v867, %v876
      %880 = vst [vmem:[#allocation2 + $0x70] sm:$0x44] %v875
      %881 = vst [vmem:[#allocation2 + $0x78] sm:$0x44] %v877
      %882 = vrot.lane.b32.xlu0 %v370, 37
      %v883 = vpop.permute.xlu0 %882
      %884 = vrot.lane.b32.xlu0 %v337, 37
      %v885 = vpop.permute.xlu0 %884
      %886 = vrot.lane.b32.xlu0 %v295, 37
      %v887 = vpop.permute.xlu0 %886
      %v888 = vrot.slane %v883, 4
      %v889 = vrot.slane %v885, 4
      %v890 = vrot.slane %v887, 4
      %v891 = vsel %vm312, %v888, %v889
      %vm892 = vcmask 302080
      %v893 = vsel %vm892, %v883, %v891
      %v894 = vsel %vm312, %v889, %v890
      %v895 = vsel %vm892, %v885, %v894
      %898 = vst [vmem:[#allocation2 + $0x70] sm:$0x88] %v893
      %899 = vst [vmem:[#allocation2 + $0x78] sm:$0x88] %v895
      %900 = vrot.lane.b32.xlu0 %v267, 36
      %v901 = vpop.permute.xlu0 %900
      %902 = vrot.lane.b32.xlu0 %v274, 36
      %v903 = vpop.permute.xlu0 %902
      %904 = vrot.lane.b32.xlu0 %v395, 36
      %v905 = vpop.permute.xlu0 %904
      %v906 = vrot.slane %v901, 4
      %v907 = vrot.slane %v903, 4
      %v908 = vrot.slane %v905, 4
      %v909 = vsel %vm312, %v906, %v907
      %vm910 = vcmask 293888
      %v911 = vsel %vm910, %v901, %v909
      %v912 = vsel %vm312, %v907, %v908
      %v913 = vsel %vm910, %v903, %v912
      %916 = vst [vmem:[#allocation2 + $0x80] sm:$0x11] %v911
      %917 = vst [vmem:[#allocation2 + $0x88] sm:$0x11] %v913
      %918 = vrot.lane.b32.xlu0 %v295, 35
      %v919 = vpop.permute.xlu0 %918
      %920 = vrot.lane.b32.xlu0 %v267, 35
      %v921 = vpop.permute.xlu0 %920
      %922 = vrot.lane.b32.xlu0 %v302, 35
      %v923 = vpop.permute.xlu0 %922
      %v924 = vrot.slane %v919, 4
      %v925 = vrot.slane %v921, 4
      %v926 = vrot.slane %v923, 4
      %v927 = vsel %vm312, %v924, %v925
      %vm928 = vcmask 285696
      %v929 = vsel %vm928, %v919, %v927
      %v930 = vsel %vm312, %v925, %v926
      %v931 = vsel %vm928, %v921, %v930
      %934 = vst [vmem:[#allocation2 + $0x80] sm:$0x22] %v929
      %935 = vst [vmem:[#allocation2 + $0x88] sm:$0x22] %v931
      %936 = vrot.lane.b32.xlu0 %v337, 34
      %v937 = vpop.permute.xlu0 %936
      %938 = vrot.lane.b32.xlu0 %v344, 34
      %v939 = vpop.permute.xlu0 %938
      %940 = vrot.lane.b32.xlu0 %v267, 34
      %v941 = vpop.permute.xlu0 %940
      %v942 = vrot.slane %v937, 4
      %v943 = vrot.slane %v939, 4
      %v944 = vrot.slane %v941, 4
      %v945 = vsel %vm312, %v942, %v943
      %vm946 = vcmask 277504
      %v947 = vsel %vm946, %v937, %v945
      %v948 = vsel %vm312, %v943, %v944
      %v949 = vsel %vm946, %v939, %v948
      %952 = vst [vmem:[#allocation2 + $0x80] sm:$0x44] %v947
      %953 = vst [vmem:[#allocation2 + $0x88] sm:$0x44] %v949
      %954 = vrot.lane.b32.xlu0 %v370, 18
      %v955 = vpop.permute.xlu0 %954
      %956 = vrot.lane.b32.xlu0 %v337, 18
      %v957 = vpop.permute.xlu0 %956
      %958 = vrot.lane.b32.xlu0 %v295, 18
      %v959 = vpop.permute.xlu0 %958
      %v960 = vrot.slane %v955, 4
      %v961 = vrot.slane %v957, 4
      %v962 = vrot.slane %v959, 4
      %v963 = vsel %vm312, %v960, %v961
      %vm964 = vcmask 146432
      %v965 = vsel %vm964, %v955, %v963
      %v966 = vsel %vm312, %v961, %v962
      %v967 = vsel %vm964, %v957, %v966
      %970 = vst [vmem:[#allocation2 + $0x80] sm:$0x88] %v965
      %971 = vst [vmem:[#allocation2 + $0x88] sm:$0x88] %v967
      %972 = vrot.lane.b32.xlu0 %v267, 17
      %v973 = vpop.permute.xlu0 %972
      %974 = vrot.lane.b32.xlu0 %v274, 17
      %v975 = vpop.permute.xlu0 %974
      %976 = vrot.lane.b32.xlu0 %v395, 17
      %v977 = vpop.permute.xlu0 %976
      %v978 = vrot.slane %v973, 4
      %v979 = vrot.slane %v975, 4
      %v980 = vrot.slane %v977, 4
      %v981 = vsel %vm312, %v978, %v979
      %vm982 = vcmask 138240
      %v983 = vsel %vm982, %v973, %v981
      %v984 = vsel %vm312, %v979, %v980
      %v985 = vsel %vm982, %v975, %v984
      %988 = vst [vmem:[#allocation2 + $0x90] sm:$0x11] %v983
      %989 = vst [vmem:[#allocation2 + $0x98] sm:$0x11] %v985
      %990 = vrot.lane.b32.xlu0 %v295, 16
      %v991 = vpop.permute.xlu0 %990
      %992 = vrot.lane.b32.xlu0 %v267, 16
      %v993 = vpop.permute.xlu0 %992
      %994 = vrot.lane.b32.xlu0 %v302, 16
      %v995 = vpop.permute.xlu0 %994
      %v996 = vrot.slane %v991, 4
      %v997 = vrot.slane %v993, 4
      %v998 = vrot.slane %v995, 4
      %v999 = vsel %vm312, %v996, %v997
      %vm1000 = vcmask 130048
      %v1001 = vsel %vm1000, %v991, %v999
      %v1002 = vsel %vm312, %v997, %v998
      %v1003 = vsel %vm1000, %v993, %v1002
      %1006 = vst [vmem:[#allocation2 + $0x90] sm:$0x22] %v1001
      %1007 = vst [vmem:[#allocation2 + $0x98] sm:$0x22] %v1003
      %1008 = vrot.lane.b32.xlu0 %v337, 15
      %v1009 = vpop.permute.xlu0 %1008
      %1010 = vrot.lane.b32.xlu0 %v344, 15
      %v1011 = vpop.permute.xlu0 %1010
      %1012 = vrot.lane.b32.xlu0 %v267, 15
      %v1013 = vpop.permute.xlu0 %1012
      %v1014 = vrot.slane %v1009, 4
      %v1015 = vrot.slane %v1011, 4
      %v1016 = vrot.slane %v1013, 4
      %v1017 = vsel %vm312, %v1014, %v1015
      %vm1018 = vcmask 121856
      %v1019 = vsel %vm1018, %v1009, %v1017
      %v1020 = vsel %vm312, %v1015, %v1016
      %v1021 = vsel %vm1018, %v1011, %v1020
      %1024 = vst [vmem:[#allocation2 + $0x90] sm:$0x44] %v1019
      %1025 = vst [vmem:[#allocation2 + $0x98] sm:$0x44] %v1021
      %1026 = vrot.lane.b32.xlu0 %v370, 14
      %v1027 = vpop.permute.xlu0 %1026
      %1028 = vrot.lane.b32.xlu0 %v337, 14
      %v1029 = vpop.permute.xlu0 %1028
      %1030 = vrot.lane.b32.xlu0 %v295, 14
      %v1031 = vpop.permute.xlu0 %1030
      %v1032 = vrot.slane %v1027, 4
      %v1033 = vrot.slane %v1029, 4
      %v1034 = vrot.slane %v1031, 4
      %v1035 = vsel %vm312, %v1032, %v1033
      %vm1036 = vcmask 113664
      %v1037 = vsel %vm1036, %v1027, %v1035
      %v1038 = vsel %vm312, %v1033, %v1034
      %v1039 = vsel %vm1036, %v1029, %v1038
      %1042 = vst [vmem:[#allocation2 + $0x90] sm:$0x88] %v1037
      %1043 = vst [vmem:[#allocation2 + $0x98] sm:$0x88] %v1039
      %1044 = vrot.lane.b32.xlu0 %v267, 13
      %v1045 = vpop.permute.xlu0 %1044
      %1046 = vrot.lane.b32.xlu0 %v274, 13
      %v1047 = vpop.permute.xlu0 %1046
      %1048 = vrot.lane.b32.xlu0 %v395, 13
      %v1049 = vpop.permute.xlu0 %1048
      %v1050 = vrot.slane %v1045, 4
      %v1051 = vrot.slane %v1047, 4
      %v1052 = vrot.slane %v1049, 4
      %v1053 = vsel %vm312, %v1050, %v1051
      %vm1054 = vcmask 105472
      %v1055 = vsel %vm1054, %v1045, %v1053
      %v1056 = vsel %vm312, %v1051, %v1052
      %v1057 = vsel %vm1054, %v1047, %v1056
      %1060 = vst [vmem:[#allocation2 + $0xa0] sm:$0x11] %v1055
      %1061 = vst [vmem:[#allocation2 + $0xa8] sm:$0x11] %v1057
      %1062 = vrot.lane.b32.xlu0 %v295, 12
      %v1063 = vpop.permute.xlu0 %1062
      %1064 = vrot.lane.b32.xlu0 %v267, 12
      %v1065 = vpop.permute.xlu0 %1064
      %1066 = vrot.lane.b32.xlu0 %v302, 12
      %v1067 = vpop.permute.xlu0 %1066
      %v1068 = vrot.slane %v1063, 4
      %v1069 = vrot.slane %v1065, 4
      %v1070 = vrot.slane %v1067, 4
      %v1071 = vsel %vm312, %v1068, %v1069
      %vm1072 = vcmask 97280
      %v1073 = vsel %vm1072, %v1063, %v1071
      %v1074 = vsel %vm312, %v1069, %v1070
      %v1075 = vsel %vm1072, %v1065, %v1074
      %1078 = vst [vmem:[#allocation2 + $0xa0] sm:$0x22] %v1073
      %1079 = vst [vmem:[#allocation2 + $0xa8] sm:$0x22] %v1075
      %1080 = vrot.lane.b32.xlu0 %v337, 124
      %v1081 = vpop.permute.xlu0 %1080
      %1082 = vrot.lane.b32.xlu0 %v344, 124
      %v1083 = vpop.permute.xlu0 %1082
      %v1084 = vrot.slane %v1081, 4
      %v1085 = vrot.slane %v1083, 4
      %v1086 = vsel %vm312, %v1084, %v1085
      %v1087 = vsel %vm406, %v1086, %v1083
      %v1088 = vsel %vm312, %v1085, %v402
      %v1089 = vsel %vm406, %v1088, %v397
      %1092 = vst [vmem:[#allocation2 + $0xa0] sm:$0x44] %v1087
      %1093 = vst [vmem:[#allocation2 + $0xa8] sm:$0x44] %v1089
      %1094 = vrot.lane.b32.xlu0 %v370, 123
      %v1095 = vpop.permute.xlu0 %1094
      %1096 = vrot.lane.b32.xlu0 %v337, 123
      %v1097 = vpop.permute.xlu0 %1096
      %v1098 = vrot.slane %v1095, 4
      %v1099 = vrot.slane %v1097, 4
      %v1100 = vsel %vm312, %v1098, %v1099
      %v1101 = vsel %vm424, %v1100, %v1097
      %v1102 = vsel %vm312, %v1099, %v420
      %v1103 = vsel %vm424, %v1102, %v415
      %1106 = vst [vmem:[#allocation2 + $0xa0] sm:$0x88] %v1101
      %1107 = vst [vmem:[#allocation2 + $0xa8] sm:$0x88] %v1103
      %1108 = vrot.lane.b32.xlu0 %v274, 122
      %v1109 = vpop.permute.xlu0 %1108
      %1110 = vrot.lane.b32.xlu0 %v395, 122
      %v1111 = vpop.permute.xlu0 %1110
      %v1112 = vrot.slane %v1109, 4
      %v1113 = vrot.slane %v1111, 4
      %v1114 = vsel %vm312, %v440, %v1112
      %v1115 = vsel %vm442, %v1114, %v1109
      %v1116 = vsel %vm312, %v1112, %v1113
      %v1117 = vsel %vm442, %v1116, %v1111
      %1120 = vst [vmem:[#allocation2 + $0xb0] sm:$0x11] %v1115
      %1121 = vst [vmem:[#allocation2 + $0xb8] sm:$0x11] %v1117
      %1122 = vrot.lane.b32.xlu0 %v295, 121
      %v1123 = vpop.permute.xlu0 %1122
      %1124 = vrot.lane.b32.xlu0 %v267, 121
      %v1125 = vpop.permute.xlu0 %1124
      %1126 = vrot.lane.b32.xlu0 %v302, 121
      %v1127 = vpop.permute.xlu0 %1126
      %v1128 = vrot.slane %v1123, 4
      %v1129 = vrot.slane %v1125, 4
      %v1130 = vrot.slane %v1127, 4
      %v1131 = vsel %vm312, %v1128, %v1129
      %vm1132 = vcmask 990208
      %v1133 = vsel %vm1132, %v1131, %v1125
      %v1134 = vsel %vm312, %v1129, %v1130
      %v1135 = vsel %vm1132, %v1134, %v1127
      %1138 = vst [vmem:[#allocation2 + $0xb0] sm:$0x22] %v1133
      %1139 = vst [vmem:[#allocation2 + $0xb8] sm:$0x22] %v1135
      %1140 = vrot.lane.b32.xlu0 %v337, 120
      %v1141 = vpop.permute.xlu0 %1140
      %1142 = vrot.lane.b32.xlu0 %v344, 120
      %v1143 = vpop.permute.xlu0 %1142
      %1144 = vrot.lane.b32.xlu0 %v267, 120
      %v1145 = vpop.permute.xlu0 %1144
      %v1146 = vrot.slane %v1141, 4
      %v1147 = vrot.slane %v1143, 4
      %v1148 = vrot.slane %v1145, 4
      %v1149 = vsel %vm312, %v1146, %v1147
      %vm1150 = vcmask 982016
      %v1151 = vsel %vm1150, %v1149, %v1143
      %v1152 = vsel %vm312, %v1147, %v1148
      %v1153 = vsel %vm1150, %v1152, %v1145
      %1156 = vst [vmem:[#allocation2 + $0xb0] sm:$0x44] %v1151
      %1157 = vst [vmem:[#allocation2 + $0xb8] sm:$0x44] %v1153
      %1158 = vrot.lane.b32.xlu0 %v370, 119
      %v1159 = vpop.permute.xlu0 %1158
      %1160 = vrot.lane.b32.xlu0 %v337, 119
      %v1161 = vpop.permute.xlu0 %1160
      %1162 = vrot.lane.b32.xlu0 %v295, 119
      %v1163 = vpop.permute.xlu0 %1162
      %v1164 = vrot.slane %v1159, 4
      %v1165 = vrot.slane %v1161, 4
      %v1166 = vrot.slane %v1163, 4
      %v1167 = vsel %vm312, %v1164, %v1165
      %vm1168 = vcmask 973824
      %v1169 = vsel %vm1168, %v1167, %v1161
      %v1170 = vsel %vm312, %v1165, %v1166
      %v1171 = vsel %vm1168, %v1170, %v1163
      %1174 = vst [vmem:[#allocation2 + $0xb0] sm:$0x88] %v1169
      %1175 = vst [vmem:[#allocation2 + $0xb8] sm:$0x88] %v1171
      %1176 = vrot.lane.b32.xlu0 %v267, 118
      %v1177 = vpop.permute.xlu0 %1176
      %1178 = vrot.lane.b32.xlu0 %v274, 118
      %v1179 = vpop.permute.xlu0 %1178
      %1180 = vrot.lane.b32.xlu0 %v395, 118
      %v1181 = vpop.permute.xlu0 %1180
      %v1182 = vrot.slane %v1177, 4
      %v1183 = vrot.slane %v1179, 4
      %v1184 = vrot.slane %v1181, 4
      %v1185 = vsel %vm312, %v1182, %v1183
      %vm1186 = vcmask 965632
      %v1187 = vsel %vm1186, %v1185, %v1179
      %v1188 = vsel %vm312, %v1183, %v1184
      %v1189 = vsel %vm1186, %v1188, %v1181
      %1192 = vst [vmem:[#allocation2 + $0xc0] sm:$0x11] %v1187
      %1193 = vst [vmem:[#allocation2 + $0xc8] sm:$0x11] %v1189
      %v1194 = vld [vmem:[%s1] sm:$0xf]
      %v1195 = vld [vmem:[%s1 + $0x4] sm:$0xf]
      %v1196 = vld [vmem:[#allocation2] sm:$0xff]
      %v1197 = vld [vmem:[#allocation2 + $0x8] sm:$0xff]
      %v1198 = vld [vmem:[#allocation2 + $0x10] sm:$0xff]
      %v1199 = vld [vmem:[#allocation2 + $0x18] sm:$0xff]
      %v1200 = vld [vmem:[#allocation2 + $0x20] sm:$0xff]
      %v1201 = vld [vmem:[#allocation2 + $0x28] sm:$0xff]
      %v1202 = vld [vmem:[#allocation2 + $0x30] sm:$0xff]
      %v1203 = vld [vmem:[#allocation2 + $0x38] sm:$0xff]
      %v1204 = vld [vmem:[#allocation2 + $0x40] sm:$0xff]
      %v1205 = vld [vmem:[#allocation2 + $0x48] sm:$0xff]
      %v1206 = vld [vmem:[#allocation2 + $0x50] sm:$0xff]
      %v1207 = vld [vmem:[#allocation2 + $0x58] sm:$0xff]
      %v1208 = vld [vmem:[#allocation2 + $0x60] sm:$0xff]
      %v1209 = vld [vmem:[#allocation2 + $0x68] sm:$0xff]
      %v1210 = vld [vmem:[#allocation2 + $0x70] sm:$0xff]
      %v1211 = vld [vmem:[#allocation2 + $0x78] sm:$0xff]
      %v1212 = vld [vmem:[#allocation2 + $0x80] sm:$0xff]
      %v1213 = vld [vmem:[#allocation2 + $0x88] sm:$0xff]
      %v1214 = vld [vmem:[#allocation2 + $0x90] sm:$0xff]
      %v1215 = vld [vmem:[#allocation2 + $0x98] sm:$0xff]
      %v1216 = vld [vmem:[#allocation2 + $0xa0] sm:$0xff]
      %v1217 = vld [vmem:[#allocation2 + $0xa8] sm:$0xff]
      %v1218 = vld [vmem:[#allocation2 + $0xb0] sm:$0xff]
      %v1219 = vld [vmem:[#allocation2 + $0xb8] sm:$0xff]
      %v1220 = vld [vmem:[#allocation2 + $0xc0] sm:$0x11]
      %v1221 = vld [vmem:[#allocation2 + $0xc8] sm:$0x11]
      %v1222 = vld [vmem:[%s2] sm:$0xff]
      %v1223 = vld [vmem:[%s2 + $0x8] sm:$0xff]
      %1225 = vset.pattern.permute.xlu0 0
      %1226 = vperm.xlu0 %1225, %v1222
      %v1227 = vpop.permute.xlu0 %1226
      %1230 = vset.pattern.permute.xlu0 0
      %1231 = vperm.xlu0 %1230, %v1223
      %v1232 = vpop.permute.xlu0 %1231
      %v1236 = vunpack.c.l.b16 %v1194
      %v1237 = vunpack.c.l.b16 %v1195
      %v1238 = vpack.c.b16 %v1237, %v1236
      %v1265 = vunpack.c.l.b16 %v1196
      %v1266 = vunpack.c.h.b16 %v1196
      %v1267 = vunpack.c.l.b16 %v1197
      %v1268 = vunpack.c.h.b16 %v1197
      %v1269 = vunpack.c.l.b16 %v1198
      %v1270 = vunpack.c.h.b16 %v1198
      %v1271 = vunpack.c.l.b16 %v1199
      %v1272 = vunpack.c.h.b16 %v1199
      %v1273 = vunpack.c.l.b16 %v1200
      %v1274 = vunpack.c.h.b16 %v1200
      %v1275 = vunpack.c.l.b16 %v1201
      %v1276 = vunpack.c.h.b16 %v1201
      %v1277 = vunpack.c.l.b16 %v1202
      %v1278 = vunpack.c.h.b16 %v1202
      %v1279 = vunpack.c.l.b16 %v1203
      %v1280 = vunpack.c.h.b16 %v1203
      %v1281 = vunpack.c.l.b16 %v1204
      %v1282 = vunpack.c.h.b16 %v1204
      %v1283 = vunpack.c.l.b16 %v1205
      %v1284 = vunpack.c.h.b16 %v1205
      %v1285 = vunpack.c.l.b16 %v1206
      %v1286 = vunpack.c.h.b16 %v1206
      %v1287 = vunpack.c.l.b16 %v1207
      %v1288 = vunpack.c.h.b16 %v1207
      %v1289 = vunpack.c.l.b16 %v1208
      %v1290 = vunpack.c.h.b16 %v1208
      %v1291 = vunpack.c.l.b16 %v1209
      %v1292 = vunpack.c.h.b16 %v1209
      %v1293 = vunpack.c.l.b16 %v1210
      %v1294 = vunpack.c.h.b16 %v1210
      %v1295 = vunpack.c.l.b16 %v1211
      %v1296 = vunpack.c.h.b16 %v1211
      %v1297 = vunpack.c.l.b16 %v1212
      %v1298 = vunpack.c.h.b16 %v1212
      %v1299 = vunpack.c.l.b16 %v1213
      %v1300 = vunpack.c.h.b16 %v1213
      %v1301 = vunpack.c.l.b16 %v1214
      %v1302 = vunpack.c.h.b16 %v1214
      %v1303 = vunpack.c.l.b16 %v1215
      %v1304 = vunpack.c.h.b16 %v1215
      %v1305 = vunpack.c.l.b16 %v1216
      %v1306 = vunpack.c.h.b16 %v1216
      %v1307 = vunpack.c.l.b16 %v1217
      %v1308 = vunpack.c.h.b16 %v1217
      %v1309 = vunpack.c.l.b16 %v1218
      %v1310 = vunpack.c.h.b16 %v1218
      %v1311 = vunpack.c.l.b16 %v1219
      %v1312 = vunpack.c.h.b16 %v1219
      %v1313 = vunpack.c.l.b16 %v1220
      %v1314 = vunpack.c.h.b16 %v1220
      %v1315 = vunpack.c.l.b16 %v1221
      %v1316 = vunpack.c.h.b16 %v1221
      %v1317 = vpack.c.b16 %v1269, %v1265
      %v1318 = vpack.c.b16 %v1270, %v1266
      %v1319 = vpack.c.b16 %v1271, %v1267
      %v1320 = vpack.c.b16 %v1272, %v1268
      %v1321 = vpack.c.b16 %v1277, %v1273
      %v1322 = vpack.c.b16 %v1278, %v1274
      %v1323 = vpack.c.b16 %v1279, %v1275
      %v1324 = vpack.c.b16 %v1280, %v1276
      %v1325 = vpack.c.b16 %v1285, %v1281
      %v1326 = vpack.c.b16 %v1286, %v1282
      %v1327 = vpack.c.b16 %v1287, %v1283
      %v1328 = vpack.c.b16 %v1288, %v1284
      %v1329 = vpack.c.b16 %v1293, %v1289
      %v1330 = vpack.c.b16 %v1294, %v1290
      %v1331 = vpack.c.b16 %v1295, %v1291
      %v1332 = vpack.c.b16 %v1296, %v1292
      %v1333 = vpack.c.b16 %v1301, %v1297
      %v1334 = vpack.c.b16 %v1302, %v1298
      %v1335 = vpack.c.b16 %v1303, %v1299
      %v1336 = vpack.c.b16 %v1304, %v1300
      %v1337 = vpack.c.b16 %v1309, %v1305
      %v1338 = vpack.c.b16 %v1310, %v1306
      %v1339 = vpack.c.b16 %v1311, %v1307
      %v1340 = vpack.c.b16 %v1312, %v1308
      %v1341 = vpack.c.b16 %v1313, %v1313
      %v1342 = vpack.c.b16 %v1314, %v1314
      %v1343 = vpack.c.b16 %v1315, %v1315
      %v1344 = vpack.c.b16 %v1316, %v1316
      %vm1369 = vcmask 801792
      %v1371 = vsel %vm1369, %v1238, 0
      %vm1373 = vcmask 1040384
      %v1375 = vsel %vm1373, %v1341, 0
      %v1378 = vsel %vm1373, %v1342, 0
      %v1381 = vsel %vm1373, %v1343, 0
      %v1384 = vsel %vm1373, %v1344, 0
      %1386 = vmatprep.subr.bf16.mxu0 %v1318
      %1387 = vmatpush1.bf16.msra.mxu0 %v1317
      %1388 = vmatprep.subr.bf16.mxu0 %v1322
      %1389 = vmatpush1.bf16.msra.mxu0 %v1321
      %1390 = vmatprep.subr.bf16.mxu0 %v1326
      %1391 = vmatpush1.bf16.msra.mxu0 %v1325
      %1392 = vmatprep.subr.bf16.mxu0 %v1330
      %1393 = vmatpush1.bf16.msra.mxu0 %v1329
      %1394 = vmatprep.subr.bf16.mxu0 %v1334
      %1395 = vmatpush1.bf16.msra.mxu0 %v1333
      %1396 = vmatprep.subr.bf16.mxu0 %v1338
      %1397 = vmatpush1.bf16.msra.mxu0 %v1337
      %1398 = vmatprep.subr.bf16.mxu0 %v1378
      %1399 = vmatpush1.bf16.msra.mxu0 %v1375
      %1400 = vmatprep.subr.bf16.mxu0 0
      %1401 = vmatpush1.bf16.msra.mxu0 0
      %1402 = vmatprep.subr.bf16.mxu0 0
      %1403 = vmatpush1.bf16.msra.mxu0 0
      %1404 = vmatprep.subr.bf16.mxu0 0
      %1405 = vmatpush1.bf16.msra.mxu0 0
      %1406 = vmatprep.subr.bf16.mxu0 0
      %1407 = vmatpush1.bf16.msra.mxu0 0
      %1408 = vmatprep.subr.bf16.mxu0 0
      %1409 = vmatpush1.bf16.msra.mxu0 0
      %1410 = vmatprep.subr.bf16.mxu0 0
      %1411 = vmatpush1.bf16.msra.mxu0 0
      %1412 = vmatprep.subr.bf16.mxu0 0
      %1413 = vmatpush1.bf16.msra.mxu0 0
      %1414 = vmatprep.subr.bf16.mxu0 0
      %1415 = vmatpush1.bf16.msra.mxu0 0
      %1416 = vmatprep.subr.bf16.mxu0 0
      %1417 = vmatpush1.bf16.msra.mxu0 0
      %1418 = vmatprep.mubr.bf16.mxu0 0
      %1419 = vmatmul.mubr.bf16.gmra.mrb[0].mxu0 %v1371
      %v1420 = vpop.f32.mrb[0].mxu0
      %v1421 = vadd.f32 %v1227, %v1420
      %v1422 = vpop.f32.mrb[0].mxu0
      %v1423 = vadd.f32 %v1227, %v1422
      %v1424 = vpop.f32.mrb[0].mxu0
      %v1425 = vadd.f32 %v1232, %v1424
      %v1426 = vpop.f32.mrb[0].mxu0
      %v1427 = vadd.f32 %v1232, %v1426
      %1428 = vdwg.mxu0
      %1429 = vmatprep.subr.bf16.mxu0 %v1320
      %1430 = vmatpush1.bf16.msra.mxu0 %v1319
      %1431 = vmatprep.subr.bf16.mxu0 %v1324
      %1432 = vmatpush1.bf16.msra.mxu0 %v1323
      %1433 = vmatprep.subr.bf16.mxu0 %v1328
      %1434 = vmatpush1.bf16.msra.mxu0 %v1327
      %1435 = vmatprep.subr.bf16.mxu0 %v1332
      %1436 = vmatpush1.bf16.msra.mxu0 %v1331
      %1437 = vmatprep.subr.bf16.mxu0 %v1336
      %1438 = vmatpush1.bf16.msra.mxu0 %v1335
      %1439 = vmatprep.subr.bf16.mxu0 %v1340
      %1440 = vmatpush1.bf16.msra.mxu0 %v1339
      %1441 = vmatprep.subr.bf16.mxu0 %v1384
      %1442 = vmatpush1.bf16.msra.mxu0 %v1381
      %1443 = vmatprep.subr.bf16.mxu0 0
      %1444 = vmatpush1.bf16.msra.mxu0 0
      %1445 = vmatprep.subr.bf16.mxu0 0
      %1446 = vmatpush1.bf16.msra.mxu0 0
      %1447 = vmatprep.subr.bf16.mxu0 0
      %1448 = vmatpush1.bf16.msra.mxu0 0
      %1449 = vmatprep.subr.bf16.mxu0 0
      %1450 = vmatpush1.bf16.msra.mxu0 0
      %1451 = vmatprep.subr.bf16.mxu0 0
      %1452 = vmatpush1.bf16.msra.mxu0 0
      %1453 = vmatprep.subr.bf16.mxu0 0
      %1454 = vmatpush1.bf16.msra.mxu0 0
      %1455 = vmatprep.subr.bf16.mxu0 0
      %1456 = vmatpush1.bf16.msra.mxu0 0
      %1457 = vmatprep.subr.bf16.mxu0 0
      %1458 = vmatpush1.bf16.msra.mxu0 0
      %1459 = vmatprep.subr.bf16.mxu0 0
      %1460 = vmatpush1.bf16.msra.mxu0 0
      %1461 = vmatprep.mubr.bf16.mxu0 0
      %1462 = vmatmul.mubr.bf16.gmra.mrb[0].mxu0 %v1371
      %v1463 = vpop.f32.mrb[0].mxu0
      %v1464 = vadd.f32 %v1227, %v1463
      %v1465 = vpop.f32.mrb[0].mxu0
      %v1466 = vadd.f32 %v1227, %v1465
      %v1467 = vpop.f32.mrb[0].mxu0
      %v1468 = vadd.f32 %v1232, %v1467
      %v1469 = vpop.f32.mrb[0].mxu0
      %v1470 = vadd.f32 %v1232, %v1469
      %1471 = vdwg.mxu0
      %v1472 = vmul.f32 %v1421, 0.01
      %v1473 = vmul.f32 %v1423, 0.01
      %v1474 = vmul.f32 %v1464, 0.01
      %v1475 = vmul.f32 %v1466, 0.01
      %v1476 = vmul.f32 %v1425, 0.01
      %v1477 = vmul.f32 %v1427, 0.01
      %v1478 = vmul.f32 %v1468, 0.01
      %v1479 = vmul.f32 %v1470, 0.01
      %v1480 = vmax.f32 %v1421, %v1472
      %v1481 = vmax.f32 %v1423, %v1473
      %v1482 = vmax.f32 %v1464, %v1474
      %v1483 = vmax.f32 %v1466, %v1475
      %v1484 = vmax.f32 %v1425, %v1476
      %v1485 = vmax.f32 %v1427, %v1477
      %v1486 = vmax.f32 %v1468, %v1478
      %v1487 = vmax.f32 %v1470, %v1479
      %v1488 = vld [vmem:[%s5] sm:$0xf]
      %v1490 = vlaneseq
      %v1491 = vshrl.u32 %v1490, 7
      %v1492 = vsub.s32 0, %v1491
      %v1493 = vrot.slane %v1488, %v1492
      %v1494 = vlaneseq
      %v1495 = vshrl.u32 %v1494, 7
      %v1496 = vsub.s32 1, %v1495
      %v1497 = vrot.slane %v1488, %v1496
      %v1498 = vlaneseq
      %v1499 = vshrl.u32 %v1498, 7
      %v1500 = vsub.s32 2, %v1499
      %v1501 = vrot.slane %v1488, %v1500
      %v1502 = vlaneseq
      %v1503 = vshrl.u32 %v1502, 7
      %v1504 = vsub.s32 3, %v1503
      %v1505 = vrot.slane %v1488, %v1504
      %v1510 = vmul.f32 %v1480, %v1493
      %v1511 = vmul.f32 %v1481, %v1497
      %v1512 = vmul.f32 %v1482, %v1501
      %v1513 = vmul.f32 %v1483, %v1505
      %v1514 = vmul.f32 %v1484, %v1493
      %v1515 = vmul.f32 %v1485, %v1497
      %v1516 = vmul.f32 %v1486, %v1501
      %v1517 = vmul.f32 %v1487, %v1505
      %1518 = vst [vmem:[#allocation3] sm:$0xff] 0
      %1519 = vst [vmem:[#allocation3 + $0x28] sm:$0xff] 0
      %1520 = vst [vmem:[#allocation3 + $0x30] sm:$0xff] 0
      %v1521 = vpack.c.bf16 %v1514, %v1510
      %v1522 = vpack.c.bf16 %v1515, %v1511
      %v1523 = vpack.c.bf16 %v1516, %v1512
      %v1524 = vpack.c.bf16 %v1517, %v1513
      %1525 = vst [vmem:[#allocation3 + $0x8] sm:$0xff] %v1521
      %1526 = vst [vmem:[#allocation3 + $0x10] sm:$0xff] %v1522
      %1527 = vst [vmem:[#allocation3 + $0x18] sm:$0xff] %v1523
      %1528 = vst [vmem:[#allocation3 + $0x20] sm:$0xff] %v1524
      %v1529 = vld [vmem:[#allocation3] sm:$0xff]
      %v1530 = vld [vmem:[#allocation3 + $0x8] sm:$0xff]
      %v1531 = vld [vmem:[#allocation3 + $0x10] sm:$0xff]
      %v1532 = vld [vmem:[#allocation3 + $0x18] sm:$0xff]
      %v1533 = vld [vmem:[#allocation3 + $0x20] sm:$0xff]
      %v1534 = vld [vmem:[#allocation3 + $0x28] sm:$0xff]
      %v1535 = vld [vmem:[#allocation3 + $0x30] sm:$0xff]
      %1543 = vrot.lane.b32.xlu0 %v1529, 69
      %v1544 = vpop.permute.xlu0 %1543
      %1545 = vrot.lane.b32.xlu0 %v1530, 69
      %v1546 = vpop.permute.xlu0 %1545
      %1547 = vrot.lane.b32.xlu0 %v1531, 69
      %v1548 = vpop.permute.xlu0 %1547
      %1549 = vrot.lane.b32.xlu0 %v1532, 69
      %v1550 = vpop.permute.xlu0 %1549
      %1551 = vrot.lane.b32.xlu0 %v1533, 69
      %v1552 = vpop.permute.xlu0 %1551
      %1553 = vrot.lane.b32.xlu0 %v1534, 69
      %v1554 = vpop.permute.xlu0 %1553
      %1555 = vrot.lane.b32.xlu0 %v1535, 69
      %v1556 = vpop.permute.xlu0 %1555
      %vm1557 = vcmask 564224
      %v1558 = vsel %vm1557, %v1544, %v1546
      %v1559 = vsel %vm1557, %v1546, %v1548
      %v1560 = vsel %vm1557, %v1548, %v1550
      %v1561 = vsel %vm1557, %v1550, %v1552
      %v1562 = vsel %vm1557, %v1552, %v1554
      %v1563 = vsel %vm1557, %v1554, %v1556
      %1570 = vst [vmem:[#allocation4] sm:$0xff] %v1558
      %1571 = vst [vmem:[#allocation4 + $0x8] sm:$0xff] %v1559
      %1572 = vst [vmem:[#allocation4 + $0x10] sm:$0xff] %v1560
      %1573 = vst [vmem:[#allocation4 + $0x18] sm:$0xff] %v1561
      %1574 = vst [vmem:[#allocation4 + $0x20] sm:$0xff] %v1562
      %1575 = vst [vmem:[#allocation4 + $0x28] sm:$0xff] %v1563
      %v1576 = vld [vmem:[#allocation3] sm:$0xff]
      %v1577 = vld [vmem:[#allocation3 + $0x8] sm:$0xff]
      %v1578 = vld [vmem:[#allocation3 + $0x10] sm:$0xff]
      %v1579 = vld [vmem:[#allocation3 + $0x18] sm:$0xff]
      %v1580 = vld [vmem:[#allocation3 + $0x20] sm:$0xff]
      %v1581 = vld [vmem:[#allocation3 + $0x28] sm:$0xff]
      %v1582 = vld [vmem:[#allocation3 + $0x30] sm:$0xff]
      %1590 = vrot.lane.b32.xlu0 %v1576, 68
      %v1591 = vpop.permute.xlu0 %1590
      %1592 = vrot.lane.b32.xlu0 %v1577, 68
      %v1593 = vpop.permute.xlu0 %1592
      %1594 = vrot.lane.b32.xlu0 %v1578, 68
      %v1595 = vpop.permute.xlu0 %1594
      %1596 = vrot.lane.b32.xlu0 %v1579, 68
      %v1597 = vpop.permute.xlu0 %1596
      %1598 = vrot.lane.b32.xlu0 %v1580, 68
      %v1599 = vpop.permute.xlu0 %1598
      %1600 = vrot.lane.b32.xlu0 %v1581, 68
      %v1601 = vpop.permute.xlu0 %1600
      %1602 = vrot.lane.b32.xlu0 %v1582, 68
      %v1603 = vpop.permute.xlu0 %1602
      %vm1604 = vcmask 556032
      %v1605 = vsel %vm1604, %v1591, %v1593
      %v1606 = vsel %vm1604, %v1593, %v1595
      %v1607 = vsel %vm1604, %v1595, %v1597
      %v1608 = vsel %vm1604, %v1597, %v1599
      %v1609 = vsel %vm1604, %v1599, %v1601
      %v1610 = vsel %vm1604, %v1601, %v1603
      %1617 = vst [vmem:[#allocation4 + $0x30] sm:$0xff] %v1605
      %1618 = vst [vmem:[#allocation4 + $0x38] sm:$0xff] %v1606
      %1619 = vst [vmem:[#allocation4 + $0x40] sm:$0xff] %v1607
      %1620 = vst [vmem:[#allocation4 + $0x48] sm:$0xff] %v1608
      %1621 = vst [vmem:[#allocation4 + $0x50] sm:$0xff] %v1609
      %1622 = vst [vmem:[#allocation4 + $0x58] sm:$0xff] %v1610
      %v1623 = vld [vmem:[#allocation3] sm:$0xff]
      %v1624 = vld [vmem:[#allocation3 + $0x8] sm:$0xff]
      %v1625 = vld [vmem:[#allocation3 + $0x10] sm:$0xff]
      %v1626 = vld [vmem:[#allocation3 + $0x18] sm:$0xff]
      %v1627 = vld [vmem:[#allocation3 + $0x20] sm:$0xff]
      %v1628 = vld [vmem:[#allocation3 + $0x28] sm:$0xff]
      %v1629 = vld [vmem:[#allocation3 + $0x30] sm:$0xff]
      %1637 = vrot.lane.b32.xlu0 %v1623, 67
      %v1638 = vpop.permute.xlu0 %1637
      %1639 = vrot.lane.b32.xlu0 %v1624, 67
      %v1640 = vpop.permute.xlu0 %1639
      %1641 = vrot.lane.b32.xlu0 %v1625, 67
      %v1642 = vpop.permute.xlu0 %1641
      %1643 = vrot.lane.b32.xlu0 %v1626, 67
      %v1644 = vpop.permute.xlu0 %1643
      %1645 = vrot.lane.b32.xlu0 %v1627, 67
      %v1646 = vpop.permute.xlu0 %1645
      %1647 = vrot.lane.b32.xlu0 %v1628, 67
      %v1648 = vpop.permute.xlu0 %1647
      %1649 = vrot.lane.b32.xlu0 %v1629, 67
      %v1650 = vpop.permute.xlu0 %1649
      %vm1651 = vcmask 547840
      %v1652 = vsel %vm1651, %v1638, %v1640
      %v1653 = vsel %vm1651, %v1640, %v1642
      %v1654 = vsel %vm1651, %v1642, %v1644
      %v1655 = vsel %vm1651, %v1644, %v1646
      %v1656 = vsel %vm1651, %v1646, %v1648
      %v1657 = vsel %vm1651, %v1648, %v1650
      %1664 = vst [vmem:[#allocation4 + $0x60] sm:$0xff] %v1652
      %1665 = vst [vmem:[#allocation4 + $0x68] sm:$0xff] %v1653
      %1666 = vst [vmem:[#allocation4 + $0x70] sm:$0xff] %v1654
      %1667 = vst [vmem:[#allocation4 + $0x78] sm:$0xff] %v1655
      %1668 = vst [vmem:[#allocation4 + $0x80] sm:$0xff] %v1656
      %1669 = vst [vmem:[#allocation4 + $0x88] sm:$0xff] %v1657
      %v1670 = vld [vmem:[#allocation3] sm:$0xff]
      %v1671 = vld [vmem:[#allocation3 + $0x8] sm:$0xff]
      %v1672 = vld [vmem:[#allocation3 + $0x10] sm:$0xff]
      %v1673 = vld [vmem:[#allocation3 + $0x18] sm:$0xff]
      %v1674 = vld [vmem:[#allocation3 + $0x20] sm:$0xff]
      %v1675 = vld [vmem:[#allocation3 + $0x28] sm:$0xff]
      %v1676 = vld [vmem:[#allocation3 + $0x30] sm:$0xff]
      %1684 = vrot.lane.b32.xlu0 %v1670, 66
      %v1685 = vpop.permute.xlu0 %1684
      %1686 = vrot.lane.b32.xlu0 %v1671, 66
      %v1687 = vpop.permute.xlu0 %1686
      %1688 = vrot.lane.b32.xlu0 %v1672, 66
      %v1689 = vpop.permute.xlu0 %1688
      %1690 = vrot.lane.b32.xlu0 %v1673, 66
      %v1691 = vpop.permute.xlu0 %1690
      %1692 = vrot.lane.b32.xlu0 %v1674, 66
      %v1693 = vpop.permute.xlu0 %1692
      %1694 = vrot.lane.b32.xlu0 %v1675, 66
      %v1695 = vpop.permute.xlu0 %1694
      %1696 = vrot.lane.b32.xlu0 %v1676, 66
      %v1697 = vpop.permute.xlu0 %1696
      %vm1698 = vcmask 539648
      %v1699 = vsel %vm1698, %v1685, %v1687
      %v1700 = vsel %vm1698, %v1687, %v1689
      %v1701 = vsel %vm1698, %v1689, %v1691
      %v1702 = vsel %vm1698, %v1691, %v1693
      %v1703 = vsel %vm1698, %v1693, %v1695
      %v1704 = vsel %vm1698, %v1695, %v1697
      %1711 = vst [vmem:[#allocation4 + $0x90] sm:$0xff] %v1699
      %1712 = vst [vmem:[#allocation4 + $0x98] sm:$0xff] %v1700
      %1713 = vst [vmem:[#allocation4 + $0xa0] sm:$0xff] %v1701
      %1714 = vst [vmem:[#allocation4 + $0xa8] sm:$0xff] %v1702
      %1715 = vst [vmem:[#allocation4 + $0xb0] sm:$0xff] %v1703
      %1716 = vst [vmem:[#allocation4 + $0xb8] sm:$0xff] %v1704
      %v1717 = vld [vmem:[#allocation3] sm:$0xff]
      %v1718 = vld [vmem:[#allocation3 + $0x8] sm:$0xff]
      %v1719 = vld [vmem:[#allocation3 + $0x10] sm:$0xff]
      %v1720 = vld [vmem:[#allocation3 + $0x18] sm:$0xff]
      %v1721 = vld [vmem:[#allocation3 + $0x20] sm:$0xff]
      %v1722 = vld [vmem:[#allocation3 + $0x28] sm:$0xff]
      %v1723 = vld [vmem:[#allocation3 + $0x30] sm:$0xff]
      %1731 = vrot.lane.b32.xlu0 %v1717, 65
      %v1732 = vpop.permute.xlu0 %1731
      %1733 = vrot.lane.b32.xlu0 %v1718, 65
      %v1734 = vpop.permute.xlu0 %1733
      %1735 = vrot.lane.b32.xlu0 %v1719, 65
      %v1736 = vpop.permute.xlu0 %1735
      %1737 = vrot.lane.b32.xlu0 %v1720, 65
      %v1738 = vpop.permute.xlu0 %1737
      %1739 = vrot.lane.b32.xlu0 %v1721, 65
      %v1740 = vpop.permute.xlu0 %1739
      %1741 = vrot.lane.b32.xlu0 %v1722, 65
      %v1742 = vpop.permute.xlu0 %1741
      %1743 = vrot.lane.b32.xlu0 %v1723, 65
      %v1744 = vpop.permute.xlu0 %1743
      %vm1745 = vcmask 531456
      %v1746 = vsel %vm1745, %v1732, %v1734
      %v1747 = vsel %vm1745, %v1734, %v1736
      %v1748 = vsel %vm1745, %v1736, %v1738
      %v1749 = vsel %vm1745, %v1738, %v1740
      %v1750 = vsel %vm1745, %v1740, %v1742
      %v1751 = vsel %vm1745, %v1742, %v1744
      %1758 = vst [vmem:[#allocation4 + $0xc0] sm:$0xff] %v1746
      %1759 = vst [vmem:[#allocation4 + $0xc8] sm:$0xff] %v1747
      %1760 = vst [vmem:[#allocation4 + $0xd0] sm:$0xff] %v1748
      %1761 = vst [vmem:[#allocation4 + $0xd8] sm:$0xff] %v1749
      %1762 = vst [vmem:[#allocation4 + $0xe0] sm:$0xff] %v1750
      %1763 = vst [vmem:[#allocation4 + $0xe8] sm:$0xff] %v1751
      %v1764 = vld [vmem:[#allocation3] sm:$0xff]
      %v1765 = vld [vmem:[#allocation3 + $0x8] sm:$0xff]
      %v1766 = vld [vmem:[#allocation3 + $0x10] sm:$0xff]
      %v1767 = vld [vmem:[#allocation3 + $0x18] sm:$0xff]
      %v1768 = vld [vmem:[#allocation3 + $0x20] sm:$0xff]
      %v1769 = vld [vmem:[#allocation3 + $0x28] sm:$0xff]
      %v1770 = vld [vmem:[#allocation3 + $0x30] sm:$0xff]
      %1778 = vrot.lane.b32.xlu0 %v1764, 64
      %v1779 = vpop.permute.xlu0 %1778
      %1780 = vrot.lane.b32.xlu0 %v1765, 64
      %v1781 = vpop.permute.xlu0 %1780
      %1782 = vrot.lane.b32.xlu0 %v1766, 64
      %v1783 = vpop.permute.xlu0 %1782
      %1784 = vrot.lane.b32.xlu0 %v1767, 64
      %v1785 = vpop.permute.xlu0 %1784
      %1786 = vrot.lane.b32.xlu0 %v1768, 64
      %v1787 = vpop.permute.xlu0 %1786
      %1788 = vrot.lane.b32.xlu0 %v1769, 64
      %v1789 = vpop.permute.xlu0 %1788
      %1790 = vrot.lane.b32.xlu0 %v1770, 64
      %v1791 = vpop.permute.xlu0 %1790
      %vm1792 = vcmask 523264
      %v1793 = vsel %vm1792, %v1779, %v1781
      %v1794 = vsel %vm1792, %v1781, %v1783
      %v1795 = vsel %vm1792, %v1783, %v1785
      %v1796 = vsel %vm1792, %v1785, %v1787
      %v1797 = vsel %vm1792, %v1787, %v1789
      %v1798 = vsel %vm1792, %v1789, %v1791
      %1805 = vst [vmem:[#allocation4 + $0xf0] sm:$0xff] %v1793
      %1806 = vst [vmem:[#allocation4 + $0xf8] sm:$0xff] %v1794
      %1807 = vst [vmem:[#allocation4 + $0x100] sm:$0xff] %v1795
      %1808 = vst [vmem:[#allocation4 + $0x108] sm:$0xff] %v1796
      %1809 = vst [vmem:[#allocation4 + $0x110] sm:$0xff] %v1797
      %1810 = vst [vmem:[#allocation4 + $0x118] sm:$0xff] %v1798
      %v1811 = vld [vmem:[#allocation3] sm:$0xff]
      %v1812 = vld [vmem:[#allocation3 + $0x8] sm:$0xff]
      %v1813 = vld [vmem:[#allocation3 + $0x10] sm:$0xff]
      %v1814 = vld [vmem:[#allocation3 + $0x18] sm:$0xff]
      %v1815 = vld [vmem:[#allocation3 + $0x20] sm:$0xff]
      %v1816 = vld [vmem:[#allocation3 + $0x28] sm:$0xff]
      %v1817 = vld [vmem:[#allocation3 + $0x30] sm:$0xff]
      %1825 = vrot.lane.b32.xlu0 %v1811, 63
      %v1826 = vpop.permute.xlu0 %1825
      %1827 = vrot.lane.b32.xlu0 %v1812, 63
      %v1828 = vpop.permute.xlu0 %1827
      %1829 = vrot.lane.b32.xlu0 %v1813, 63
      %v1830 = vpop.permute.xlu0 %1829
      %1831 = vrot.lane.b32.xlu0 %v1814, 63
      %v1832 = vpop.permute.xlu0 %1831
      %1833 = vrot.lane.b32.xlu0 %v1815, 63
      %v1834 = vpop.permute.xlu0 %1833
      %1835 = vrot.lane.b32.xlu0 %v1816, 63
      %v1836 = vpop.permute.xlu0 %1835
      %1837 = vrot.lane.b32.xlu0 %v1817, 63
      %v1838 = vpop.permute.xlu0 %1837
      %vm1839 = vcmask 515072
      %v1840 = vsel %vm1839, %v1826, %v1828
      %v1841 = vsel %vm1839, %v1828, %v1830
      %v1842 = vsel %vm1839, %v1830, %v1832
      %v1843 = vsel %vm1839, %v1832, %v1834
      %v1844 = vsel %vm1839, %v1834, %v1836
      %v1845 = vsel %vm1839, %v1836, %v1838
      %1852 = vst [vmem:[#allocation4 + $0x120] sm:$0xff] %v1840
      %1853 = vst [vmem:[#allocation4 + $0x128] sm:$0xff] %v1841
      %1854 = vst [vmem:[#allocation4 + $0x130] sm:$0xff] %v1842
      %1855 = vst [vmem:[#allocation4 + $0x138] sm:$0xff] %v1843
      %1856 = vst [vmem:[#allocation4 + $0x140] sm:$0xff] %v1844
      %1857 = vst [vmem:[#allocation4 + $0x148] sm:$0xff] %v1845
      %v1858 = vld [vmem:[%s3] sm:$0xf]
      %v1859 = vld [vmem:[%s3 + $0x4] sm:$0x7]
      %v1860 = vld [vmem:[#allocation4] sm:$0xff]
      %v1861 = vld [vmem:[#allocation4 + $0x8] sm:$0xff]
      %v1862 = vld [vmem:[#allocation4 + $0x10] sm:$0xff]
      %v1863 = vld [vmem:[#allocation4 + $0x18] sm:$0xff]
      %v1864 = vld [vmem:[#allocation4 + $0x20] sm:$0xff]
      %v1865 = vld [vmem:[#allocation4 + $0x28] sm:$0xff]
      %v1866 = vld [vmem:[#allocation4 + $0x30] sm:$0xff]
      %v1867 = vld [vmem:[#allocation4 + $0x38] sm:$0xff]
      %v1868 = vld [vmem:[#allocation4 + $0x40] sm:$0xff]
      %v1869 = vld [vmem:[#allocation4 + $0x48] sm:$0xff]
      %v1870 = vld [vmem:[#allocation4 + $0x50] sm:$0xff]
      %v1871 = vld [vmem:[#allocation4 + $0x58] sm:$0xff]
      %v1872 = vld [vmem:[#allocation4 + $0x60] sm:$0xff]
      %v1873 = vld [vmem:[#allocation4 + $0x68] sm:$0xff]
      %v1874 = vld [vmem:[#allocation4 + $0x70] sm:$0xff]
      %v1875 = vld [vmem:[#allocation4 + $0x78] sm:$0xff]
      %v1876 = vld [vmem:[#allocation4 + $0x80] sm:$0xff]
      %v1877 = vld [vmem:[#allocation4 + $0x88] sm:$0xff]
      %v1878 = vld [vmem:[#allocation4 + $0x90] sm:$0xff]
      %v1879 = vld [vmem:[#allocation4 + $0x98] sm:$0xff]
      %v1880 = vld [vmem:[#allocation4 + $0xa0] sm:$0xff]
      %v1881 = vld [vmem:[#allocation4 + $0xa8] sm:$0xff]
      %v1882 = vld [vmem:[#allocation4 + $0xb0] sm:$0xff]
      %v1883 = vld [vmem:[#allocation4 + $0xb8] sm:$0xff]
      %v1884 = vld [vmem:[#allocation4 + $0xc0] sm:$0xff]
      %v1885 = vld [vmem:[#allocation4 + $0xc8] sm:$0xff]
      %v1886 = vld [vmem:[#allocation4 + $0xd0] sm:$0xff]
      %v1887 = vld [vmem:[#allocation4 + $0xd8] sm:$0xff]
      %v1888 = vld [vmem:[#allocation4 + $0xe0] sm:$0xff]
      %v1889 = vld [vmem:[#allocation4 + $0xe8] sm:$0xff]
      %v1890 = vld [vmem:[#allocation4 + $0xf0] sm:$0xff]
      %v1891 = vld [vmem:[#allocation4 + $0xf8] sm:$0xff]
      %v1892 = vld [vmem:[#allocation4 + $0x100] sm:$0xff]
      %v1893 = vld [vmem:[#allocation4 + $0x108] sm:$0xff]
      %v1894 = vld [vmem:[#allocation4 + $0x110] sm:$0xff]
      %v1895 = vld [vmem:[#allocation4 + $0x118] sm:$0xff]
      %v1896 = vld [vmem:[#allocation4 + $0x120] sm:$0xff]
      %v1897 = vld [vmem:[#allocation4 + $0x128] sm:$0xff]
      %v1898 = vld [vmem:[#allocation4 + $0x130] sm:$0xff]
      %v1899 = vld [vmem:[#allocation4 + $0x138] sm:$0xff]
      %v1900 = vld [vmem:[#allocation4 + $0x140] sm:$0xff]
      %v1901 = vld [vmem:[#allocation4 + $0x148] sm:$0xff]
      %v1904 = vunpack.c.l.b16 %v1858
      %v1905 = vunpack.c.l.b16 %v1859
      %v1906 = vpack.c.b16 %v1905, %v1904
      %vm1907 = vcmask 916480
      %v1909 = vsel %vm1907, %v1906, 0
      %1911 = vmatprep.subr.bf16.mxu0 %v1861
      %1912 = vmatpush1.bf16.msra.mxu0 %v1860
      %1913 = vmatprep.subr.bf16.mxu0 %v1867
      %1914 = vmatpush1.bf16.msra.mxu0 %v1866
      %1915 = vmatprep.subr.bf16.mxu0 %v1873
      %1916 = vmatpush1.bf16.msra.mxu0 %v1872
      %1917 = vmatprep.subr.bf16.mxu0 %v1879
      %1918 = vmatpush1.bf16.msra.mxu0 %v1878
      %1919 = vmatprep.subr.bf16.mxu0 %v1885
      %1920 = vmatpush1.bf16.msra.mxu0 %v1884
      %1921 = vmatprep.subr.bf16.mxu0 %v1891
      %1922 = vmatpush1.bf16.msra.mxu0 %v1890
      %1923 = vmatprep.subr.bf16.mxu0 %v1897
      %1924 = vmatpush1.bf16.msra.mxu0 %v1896
      %1925 = vmatprep.subr.bf16.mxu0 0
      %1926 = vmatpush1.bf16.msra.mxu0 0
      %1927 = vmatprep.subr.bf16.mxu0 0
      %1928 = vmatpush1.bf16.msra.mxu0 0
      %1929 = vmatprep.subr.bf16.mxu0 0
      %1930 = vmatpush1.bf16.msra.mxu0 0
      %1931 = vmatprep.subr.bf16.mxu0 0
      %1932 = vmatpush1.bf16.msra.mxu0 0
      %1933 = vmatprep.subr.bf16.mxu0 0
      %1934 = vmatpush1.bf16.msra.mxu0 0
      %1935 = vmatprep.subr.bf16.mxu0 0
      %1936 = vmatpush1.bf16.msra.mxu0 0
      %1937 = vmatprep.subr.bf16.mxu0 0
      %1938 = vmatpush1.bf16.msra.mxu0 0
      %1939 = vmatprep.subr.bf16.mxu0 0
      %1940 = vmatpush1.bf16.msra.mxu0 0
      %1941 = vmatprep.subr.bf16.mxu0 0
      %1942 = vmatpush1.bf16.msra.mxu0 0
      %1943 = vmatprep.mubr.bf16.mxu0 0
      %1944 = vmatmul.mubr.bf16.gmra.mrb[0].mxu0 %v1909
      %v1945 = vpop.f32.mrb[0].mxu0
      %v1946 = vadd.f32 0.0, %v1945
      %v1947 = vpop.f32.mrb[0].mxu0
      %v1948 = vadd.f32 0.0, %v1947
      %v1949 = vpop.f32.mrb[0].mxu0
      %v1950 = vadd.f32 0.0, %v1949
      %v1951 = vpop.f32.mrb[0].mxu0
      %v1952 = vadd.f32 0.0, %v1951
      %1953 = vdwg.mxu0
      %1954 = vmatprep.subr.bf16.mxu0 %v1863
      %1955 = vmatpush1.bf16.msra.mxu0 %v1862
      %1956 = vmatprep.subr.bf16.mxu0 %v1869
      %1957 = vmatpush1.bf16.msra.mxu0 %v1868
      %1958 = vmatprep.subr.bf16.mxu0 %v1875
      %1959 = vmatpush1.bf16.msra.mxu0 %v1874
      %1960 = vmatprep.subr.bf16.mxu0 %v1881
      %1961 = vmatpush1.bf16.msra.mxu0 %v1880
      %1962 = vmatprep.subr.bf16.mxu0 %v1887
      %1963 = vmatpush1.bf16.msra.mxu0 %v1886
      %1964 = vmatprep.subr.bf16.mxu0 %v1893
      %1965 = vmatpush1.bf16.msra.mxu0 %v1892
      %1966 = vmatprep.subr.bf16.mxu0 %v1899
      %1967 = vmatpush1.bf16.msra.mxu0 %v1898
      %1968 = vmatprep.subr.bf16.mxu0 0
      %1969 = vmatpush1.bf16.msra.mxu0 0
      %1970 = vmatprep.subr.bf16.mxu0 0
      %1971 = vmatpush1.bf16.msra.mxu0 0
      %1972 = vmatprep.subr.bf16.mxu0 0
      %1973 = vmatpush1.bf16.msra.mxu0 0
      %1974 = vmatprep.subr.bf16.mxu0 0
      %1975 = vmatpush1.bf16.msra.mxu0 0
      %1976 = vmatprep.subr.bf16.mxu0 0
      %1977 = vmatpush1.bf16.msra.mxu0 0
      %1978 = vmatprep.subr.bf16.mxu0 0
      %1979 = vmatpush1.bf16.msra.mxu0 0
      %1980 = vmatprep.subr.bf16.mxu0 0
      %1981 = vmatpush1.bf16.msra.mxu0 0
      %1982 = vmatprep.subr.bf16.mxu0 0
      %1983 = vmatpush1.bf16.msra.mxu0 0
      %1984 = vmatprep.subr.bf16.mxu0 0
      %1985 = vmatpush1.bf16.msra.mxu0 0
      %1986 = vmatprep.mubr.bf16.mxu0 0
      %1987 = vmatmul.mubr.bf16.gmra.mrb[0].mxu0 %v1909
      %v1988 = vpop.f32.mrb[0].mxu0
      %v1989 = vadd.f32 0.0, %v1988
      %v1990 = vpop.f32.mrb[0].mxu0
      %v1991 = vadd.f32 0.0, %v1990
      %v1992 = vpop.f32.mrb[0].mxu0
      %v1993 = vadd.f32 0.0, %v1992
      %v1994 = vpop.f32.mrb[0].mxu0
      %v1995 = vadd.f32 0.0, %v1994
      %1996 = vdwg.mxu0
      %1997 = vmatprep.subr.bf16.mxu0 %v1865
      %1998 = vmatpush1.bf16.msra.mxu0 %v1864
      %1999 = vmatprep.subr.bf16.mxu0 %v1871
      %2000 = vmatpush1.bf16.msra.mxu0 %v1870
      %2001 = vmatprep.subr.bf16.mxu0 %v1877
      %2002 = vmatpush1.bf16.msra.mxu0 %v1876
      %2003 = vmatprep.subr.bf16.mxu0 %v1883
      %2004 = vmatpush1.bf16.msra.mxu0 %v1882
      %2005 = vmatprep.subr.bf16.mxu0 %v1889
      %2006 = vmatpush1.bf16.msra.mxu0 %v1888
      %2007 = vmatprep.subr.bf16.mxu0 %v1895
      %2008 = vmatpush1.bf16.msra.mxu0 %v1894
      %2009 = vmatprep.subr.bf16.mxu0 %v1901
      %2010 = vmatpush1.bf16.msra.mxu0 %v1900
      %2011 = vmatprep.subr.bf16.mxu0 0
      %2012 = vmatpush1.bf16.msra.mxu0 0
      %2013 = vmatprep.subr.bf16.mxu0 0
      %2014 = vmatpush1.bf16.msra.mxu0 0
      %2015 = vmatprep.subr.bf16.mxu0 0
      %2016 = vmatpush1.bf16.msra.mxu0 0
      %2017 = vmatprep.subr.bf16.mxu0 0
      %2018 = vmatpush1.bf16.msra.mxu0 0
      %2019 = vmatprep.subr.bf16.mxu0 0
      %2020 = vmatpush1.bf16.msra.mxu0 0
      %2021 = vmatprep.subr.bf16.mxu0 0
      %2022 = vmatpush1.bf16.msra.mxu0 0
      %2023 = vmatprep.subr.bf16.mxu0 0
      %2024 = vmatpush1.bf16.msra.mxu0 0
      %2025 = vmatprep.subr.bf16.mxu0 0
      %2026 = vmatpush1.bf16.msra.mxu0 0
      %2027 = vmatprep.subr.bf16.mxu0 0
      %2028 = vmatpush1.bf16.msra.mxu0 0
      %2029 = vmatprep.mubr.bf16.mxu0 0
      %2030 = vmatmul.mubr.bf16.gmra.mrb[0].mxu0 %v1909
      %v2031 = vpop.f32.mrb[0].mxu0
      %v2032 = vadd.f32 0.0, %v2031
      %v2033 = vpop.f32.mrb[0].mxu0
      %v2034 = vadd.f32 0.0, %v2033
      %v2035 = vpop.f32.mrb[0].mxu0
      %v2036 = vadd.f32 0.0, %v2035
      %v2037 = vpop.f32.mrb[0].mxu0
      %v2038 = vadd.f32 0.0, %v2037
      %2039 = vdwg.mxu0
      %2040 = vst [vmem:[#allocation5] sm:$0xff] %v1946
      %2041 = vst [vmem:[#allocation5 + $0x8] sm:$0xff] %v1948
      %2042 = vst [vmem:[#allocation5 + $0x10] sm:$0xff] %v1989
      %2043 = vst [vmem:[#allocation5 + $0x18] sm:$0xff] %v1991
      %2044 = vst [vmem:[#allocation5 + $0x20] sm:$0xff] %v2032
      %2045 = vst [vmem:[#allocation5 + $0x28] sm:$0xff] %v2034
      %2046 = vst [vmem:[#allocation5 + $0x30] sm:$0x3f] %v1950
      %2047 = vst [vmem:[#allocation5 + $0x38] sm:$0x3f] %v1952
      %2048 = vst [vmem:[#allocation5 + $0x40] sm:$0x3f] %v1993
      %2049 = vst [vmem:[#allocation5 + $0x48] sm:$0x3f] %v1995
      %2050 = vst [vmem:[#allocation5 + $0x50] sm:$0x3f] %v2036
      %2051 = vst [vmem:[#allocation5 + $0x58] sm:$0x3f] %v2038
      %v2052 = vld [vmem:[#allocation5] sm:$0x3]
      %v2053 = vld [vmem:[#allocation5 + $0x8] sm:$0x3]
      %v2054 = vld [vmem:[#allocation5 + $0x10] sm:$0x3]
      %v2055 = vld [vmem:[#allocation5 + $0x18] sm:$0x3]
      %v2056 = vld [vmem:[#allocation5] sm:$0xc]
      %v2057 = vld [vmem:[#allocation5 + $0x8] sm:$0xc]
      %v2058 = vld [vmem:[#allocation5 + $0x10] sm:$0xc]
      %v2059 = vld [vmem:[#allocation5 + $0x18] sm:$0xc]
      %v2060 = vld [vmem:[#allocation5 + $0x20] sm:$0xc]
      %v2066 = vrot.slane %v2056, 2
      %v2067 = vrot.slane %v2057, 2
      %v2068 = vrot.slane %v2058, 2
      %v2069 = vrot.slane %v2059, 2
      %v2070 = vrot.slane %v2060, 2
      %2071 = vrot.lane.b32.xlu0 %v2066, 106
      %v2072 = vpop.permute.xlu0 %2071
      %2073 = vrot.lane.b32.xlu0 %v2067, 106
      %v2074 = vpop.permute.xlu0 %2073
      %2075 = vrot.lane.b32.xlu0 %v2068, 106
      %v2076 = vpop.permute.xlu0 %2075
      %2077 = vrot.lane.b32.xlu0 %v2069, 106
      %v2078 = vpop.permute.xlu0 %2077
      %2079 = vrot.lane.b32.xlu0 %v2070, 106
      %v2080 = vpop.permute.xlu0 %2079
      %vm2081 = vcmask 867328
      %v2082 = vsel %vm2081, %v2072, %v2074
      %v2083 = vsel %vm2081, %v2074, %v2076
      %v2084 = vsel %vm2081, %v2076, %v2078
      %v2085 = vsel %vm2081, %v2078, %v2080
      %v2090 = vadd.f32 %v2052, %v2082
      %v2091 = vadd.f32 %v2053, %v2083
      %v2092 = vadd.f32 %v2054, %v2084
      %v2093 = vadd.f32 %v2055, %v2085
      %v2094 = vld [vmem:[#allocation5] sm:$0x30]
      %v2095 = vld [vmem:[#allocation5 + $0x8] sm:$0x30]
      %v2096 = vld [vmem:[#allocation5 + $0x10] sm:$0x30]
      %v2097 = vld [vmem:[#allocation5 + $0x18] sm:$0x30]
      %v2098 = vld [vmem:[#allocation5 + $0x20] sm:$0x30]
      %v2104 = vrot.slane %v2094, 4
      %v2105 = vrot.slane %v2095, 4
      %v2106 = vrot.slane %v2096, 4
      %v2107 = vrot.slane %v2097, 4
      %v2108 = vrot.slane %v2098, 4
      %2109 = vrot.lane.b32.xlu0 %v2104, 84
      %v2110 = vpop.permute.xlu0 %2109
      %2111 = vrot.lane.b32.xlu0 %v2105, 84
      %v2112 = vpop.permute.xlu0 %2111
      %2113 = vrot.lane.b32.xlu0 %v2106, 84
      %v2114 = vpop.permute.xlu0 %2113
      %2115 = vrot.lane.b32.xlu0 %v2107, 84
      %v2116 = vpop.permute.xlu0 %2115
      %2117 = vrot.lane.b32.xlu0 %v2108, 84
      %v2118 = vpop.permute.xlu0 %2117
      %vm2119 = vcmask 687104
      %v2120 = vsel %vm2119, %v2110, %v2112
      %v2121 = vsel %vm2119, %v2112, %v2114
      %v2122 = vsel %vm2119, %v2114, %v2116
      %v2123 = vsel %vm2119, %v2116, %v2118
      %v2128 = vadd.f32 %v2090, %v2120
      %v2129 = vadd.f32 %v2091, %v2121
      %v2130 = vadd.f32 %v2092, %v2122
      %v2131 = vadd.f32 %v2093, %v2123
      %v2132 = vld [vmem:[#allocation5] sm:$0xc0]
      %v2133 = vld [vmem:[#allocation5 + $0x8] sm:$0xc0]
      %v2134 = vld [vmem:[#allocation5 + $0x10] sm:$0xc0]
      %v2135 = vld [vmem:[#allocation5 + $0x18] sm:$0xc0]
      %v2136 = vld [vmem:[#allocation5 + $0x20] sm:$0xc0]
      %v2142 = vrot.slane %v2132, 6
      %v2143 = vrot.slane %v2133, 6
      %v2144 = vrot.slane %v2134, 6
      %v2145 = vrot.slane %v2135, 6
      %v2146 = vrot.slane %v2136, 6
      %2147 = vrot.lane.b32.xlu0 %v2142, 62
      %v2148 = vpop.permute.xlu0 %2147
      %2149 = vrot.lane.b32.xlu0 %v2143, 62
      %v2150 = vpop.permute.xlu0 %2149
      %2151 = vrot.lane.b32.xlu0 %v2144, 62
      %v2152 = vpop.permute.xlu0 %2151
      %2153 = vrot.lane.b32.xlu0 %v2145, 62
      %v2154 = vpop.permute.xlu0 %2153
      %2155 = vrot.lane.b32.xlu0 %v2146, 62
      %v2156 = vpop.permute.xlu0 %2155
      %vm2157 = vcmask 506880
      %v2158 = vsel %vm2157, %v2148, %v2150
      %v2159 = vsel %vm2157, %v2150, %v2152
      %v2160 = vsel %vm2157, %v2152, %v2154
      %v2161 = vsel %vm2157, %v2154, %v2156
      %v2166 = vadd.f32 %v2128, %v2158
      %v2167 = vadd.f32 %v2129, %v2159
      %v2168 = vadd.f32 %v2130, %v2160
      %v2169 = vadd.f32 %v2131, %v2161
      %v2170 = vld [vmem:[#allocation5 + $0x30] sm:$0x3]
      %v2171 = vld [vmem:[#allocation5 + $0x38] sm:$0x3]
      %v2172 = vld [vmem:[#allocation5 + $0x40] sm:$0x3]
      %v2173 = vld [vmem:[#allocation5 + $0x48] sm:$0x3]
      %v2174 = vld [vmem:[#allocation5 + $0x50] sm:$0x3]
      %2180 = vrot.lane.b32.xlu0 %v2170, 40
      %v2181 = vpop.permute.xlu0 %2180
      %2182 = vrot.lane.b32.xlu0 %v2171, 40
      %v2183 = vpop.permute.xlu0 %2182
      %2184 = vrot.lane.b32.xlu0 %v2172, 40
      %v2185 = vpop.permute.xlu0 %2184
      %2186 = vrot.lane.b32.xlu0 %v2173, 40
      %v2187 = vpop.permute.xlu0 %2186
      %2188 = vrot.lane.b32.xlu0 %v2174, 40
      %v2189 = vpop.permute.xlu0 %2188
      %vm2190 = vcmask 326656
      %v2191 = vsel %vm2190, %v2181, %v2183
      %v2192 = vsel %vm2190, %v2183, %v2185
      %v2193 = vsel %vm2190, %v2185, %v2187
      %v2194 = vsel %vm2190, %v2187, %v2189
      %v2199 = vadd.f32 %v2166, %v2191
      %v2200 = vadd.f32 %v2167, %v2192
      %v2201 = vadd.f32 %v2168, %v2193
      %v2202 = vadd.f32 %v2169, %v2194
      %v2203 = vld [vmem:[#allocation5 + $0x30] sm:$0xc]
      %v2204 = vld [vmem:[#allocation5 + $0x38] sm:$0xc]
      %v2205 = vld [vmem:[#allocation5 + $0x40] sm:$0xc]
      %v2206 = vld [vmem:[#allocation5 + $0x48] sm:$0xc]
      %v2207 = vld [vmem:[#allocation5 + $0x50] sm:$0xc]
      %v2213 = vrot.slane %v2203, 2
      %v2214 = vrot.slane %v2204, 2
      %v2215 = vrot.slane %v2205, 2
      %v2216 = vrot.slane %v2206, 2
      %v2217 = vrot.slane %v2207, 2
      %2218 = vrot.lane.b32.xlu0 %v2213, 18
      %v2219 = vpop.permute.xlu0 %2218
      %2220 = vrot.lane.b32.xlu0 %v2214, 18
      %v2221 = vpop.permute.xlu0 %2220
      %2222 = vrot.lane.b32.xlu0 %v2215, 18
      %v2223 = vpop.permute.xlu0 %2222
      %2224 = vrot.lane.b32.xlu0 %v2216, 18
      %v2225 = vpop.permute.xlu0 %2224
      %2226 = vrot.lane.b32.xlu0 %v2217, 18
      %v2227 = vpop.permute.xlu0 %2226
      %vm2228 = vcmask 146432
      %v2229 = vsel %vm2228, %v2219, %v2221
      %v2230 = vsel %vm2228, %v2221, %v2223
      %v2231 = vsel %vm2228, %v2223, %v2225
      %v2232 = vsel %vm2228, %v2225, %v2227
      %v2237 = vadd.f32 %v2199, %v2229
      %v2238 = vadd.f32 %v2200, %v2230
      %v2239 = vadd.f32 %v2201, %v2231
      %v2240 = vadd.f32 %v2202, %v2232
      %v2241 = vld [vmem:[#allocation5 + $0x38] sm:$0x30]
      %v2242 = vld [vmem:[#allocation5 + $0x40] sm:$0x30]
      %v2243 = vld [vmem:[#allocation5 + $0x48] sm:$0x30]
      %v2244 = vld [vmem:[#allocation5 + $0x50] sm:$0x30]
      %v2245 = vld [vmem:[#allocation5 + $0x58] sm:$0x30]
      %v2251 = vrot.slane %v2241, 4
      %v2252 = vrot.slane %v2242, 4
      %v2253 = vrot.slane %v2243, 4
      %v2254 = vrot.slane %v2244, 4
      %v2255 = vrot.slane %v2245, 4
      %2256 = vrot.lane.b32.xlu0 %v2251, 124
      %v2257 = vpop.permute.xlu0 %2256
      %2258 = vrot.lane.b32.xlu0 %v2252, 124
      %v2259 = vpop.permute.xlu0 %2258
      %2260 = vrot.lane.b32.xlu0 %v2253, 124
      %v2261 = vpop.permute.xlu0 %2260
      %2262 = vrot.lane.b32.xlu0 %v2254, 124
      %v2263 = vpop.permute.xlu0 %2262
      %2264 = vrot.lane.b32.xlu0 %v2255, 124
      %v2265 = vpop.permute.xlu0 %2264
      %vm2266 = vcmask 1014784
      %v2267 = vsel %vm2266, %v2257, %v2259
      %v2268 = vsel %vm2266, %v2259, %v2261
      %v2269 = vsel %vm2266, %v2261, %v2263
      %v2270 = vsel %vm2266, %v2263, %v2265
      %v2275 = vadd.f32 %v2237, %v2267
      %v2276 = vadd.f32 %v2238, %v2268
      %v2277 = vadd.f32 %v2239, %v2269
      %v2278 = vadd.f32 %v2240, %v2270
      %v2279 = vld [vmem:[%s4] sm:$0x3]
      %2281 = vset.pattern.permute.xlu0 0
      %2282 = vperm.xlu0 %2281, %v2279
      %v2283 = vpop.permute.xlu0 %2282
      %v2285 = vadd.f32 %v2275, %v2283
      %v2286 = vadd.f32 %v2276, %v2283
      %v2287 = vadd.f32 %v2277, %v2283
      %v2288 = vadd.f32 %v2278, %v2283
      %v2293 = vcombine.low %v2285, %v2286
      %v2294 = vcombine.low %v2287, %v2288
      %v2296 = vunpack.c.l.s4 1983009808
      %v2297 = vunpack.c.0.s8 %v2296
      %v2298 = vlaneseq
      %v2299 = vshrl.u32 %v2298, 7
      %v2300 = vsub.s32 %v2297, %v2299
      %v2301 = vrot.slane %v2293, %v2300
      %v2303 = vunpack.c.l.s4 1983009808
      %v2304 = vunpack.c.0.s8 %v2303
      %v2305 = vlaneseq
      %v2306 = vshrl.u32 %v2305, 7
      %v2307 = vsub.s32 %v2304, %v2306
      %v2308 = vrot.slane %v2294, %v2307
      %v2309 = vcombine.low %v2301, %v2308
      %2311 = vst [vmem:[%s248] sm:$0xff] %v2309
      %s2312 = smul.u32 4, %s17
      %p2313 = scmp.lt.s32.totalorder %s2312, 7
      %s2314 = scalar_select %p2313, %s2312, 7
      %s2315 = smul.addr %s2314, 2
      %s2316 = scalar_lea.vmem %s6, %s2315
      // Predicated region
      $region45: #{aligner_forward.1} parent=43 // pred_check
        %p2317 = pneg %p166
      $region46: #{aligner_forward.1} parent=43 // pred_check_branch
        %2319 = sbr.rel (%p2317) target = $region48
      $region47: #{aligner_forward.1} parent=43 // pred_region
        %s2320 = smul.u32 4, %s17
      $region48: #{aligner_forward.1} parent=43 // pred_fallthru
        _
    $region44: #{aligner_forward.1} parent=5 // pred_fallthru
      _
    %p2321 = scmp.le.s32.totalorder 2, %s12
    // Predicated region
    $region49: #{aligner_forward.1} parent=5 // pred_check
      %p2322 = pneg %p2321
    $region50: #{aligner_forward.1} parent=5 // pred_check_branch
      %2324 = sbr.rel (%p2322) target = $region52
    $region51: #{aligner_forward.1} parent=5 // pred_region
      %s2325 = ssub.s32 %s12, 2
      // Predicated region
      $region53: #{aligner_forward.1} parent=51 // pred_check
        %p2326 = pneg %p172
      $region54: #{aligner_forward.1} parent=51 // pred_check_branch
        %2328 = sbr.rel (%p2326) target = $region56
      $region55: #{aligner_forward.1} parent=51 // pred_region
        %s2329 = smul.u32 4, %s18
        %p2330 = scmp.lt.s32.totalorder %s2329, 7
        %s2331 = scalar_select %p2330, %s2329, 7
        %s2332 = smul.addr %s2331, 2
        %s2333 = scalar_lea.vmem %s6, %s2332
      $region56: #{aligner_forward.1} parent=51 // pred_fallthru
        _
    $region52: #{aligner_forward.1} parent=5 // pred_fallthru
      _
  $region6: #{aligner_forward.1} parent=0 // loop_footer
    %s16 = sadd.s32 1, %s12
  $region7: #{aligner_forward.1} parent=0 // loop_footer_branch
    %11 = sbr.rel target = $region3
  $region8: #{aligner_forward.1} parent=0 // loop_exit
    _

</llo_original>
